<compile_context>
chip_gen: v7x
topology: tpu7x:2x2x1
jax: 0.10.0
libtpu: 0.0.40
codegen_flags: <defaults>
</compile_context>

<pallas_src>
from typing import List, Optional

import jax
import jax.numpy as jnp
from jax.experimental import pallas as pl
from jax.experimental.pallas import tpu as pltpu


_MIN_PALLAS_WEIGHT_BYTES = 1 << 20   # below this, plain XLA matmul is faster
_MIN_PALLAS_EOUT = 256


def _round_up(x: int, m: int) -> int:
    return ((x + m - 1) // m) * m


def _vmem_caps():
    """(physical VMEM bytes, generation-aware vmem_limit cap)."""
    phys = 128 << 20
    try:
        info = pltpu.get_tpu_info()
        phys = int(getattr(info, "vmem_capacity_bytes", phys) or phys)
    except Exception:
        pass
    # Leave headroom for Mosaic internal scratch / misc buffers.
    # v5e/v6e (128 MiB) -> 64 MiB ; v7x (64 MiB) -> 40 MiB.
    limit_cap = max(32 << 20, min(phys - (24 << 20), 64 << 20))
    return phys, limit_cap


def _pick_tn(e_out_pad: int, e_in: int, n_hops: int, batch: int,
             budget_bytes: int) -> int:
    """Largest lane-aligned E_out tile whose double-buffered working set fits.

    Prefers a tile that yields >= 2 grid steps (keeps both v7x TensorCores fed
    and enables DMA/compute pipelining); one extra step costs ~0.35 us.
    """
    best_single = None
    best_multi = None
    for tn in (2048, 1024, 512, 256, 128):
        if e_out_pad % tn != 0:
            continue
        need = 2 * (n_hops * e_in * tn * 2      # bf16 weight slab (double-buffered)
                    + n_hops * tn * 4           # f32 bias
                    + n_hops * batch * tn * 4   # f32 output
                    + batch * e_in * 2)         # bf16 rel
        if need > budget_bytes:
            continue
        if best_single is None:
            best_single = tn
        if e_out_pad // tn >= 2 and best_multi is None:
            best_multi = tn
            break
    return best_multi or best_single or 128


def _hops_kernel(rel_ref, w_ref, b_ref, out_ref):
    """One grid step == one E_out tile, all hops.

    rel_ref : (B, E_in)       bf16  (same block every step)
    w_ref   : (H, E_in, tn)   bf16  (leading n_tiles dim squeezed; contiguous slab)
    b_ref   : (H, 1, tn)      f32
    out_ref : (H, B, tn)      out dtype
    """
    rel = rel_ref[...]
    n_hops = out_ref.shape[0]
    for h in range(n_hops):                       # H is small & static -> unrolled
        acc = jnp.dot(rel, w_ref[h], preferred_element_type=jnp.float32)
        out_ref[h] = (acc + b_ref[h]).astype(out_ref.dtype)


@jax.jit
def _hops_forward(rel: jax.Array, w_tiled: jax.Array, b_tiled: jax.Array):
    """rel [B, E_in], w_tiled [n_tiles, H, E_in, tn] bf16, b_tiled [H, 1, E_pad] f32."""
    B, E_in = rel.shape
    n_tiles, H, _, tn = w_tiled.shape
    e_pad = n_tiles * tn
    out_dtype = rel.dtype
    out_bytes = jnp.dtype(out_dtype).itemsize

    rel_c = rel.astype(jnp.bfloat16)              # bf16 operands, f32 accumulation

    _, limit_cap = _vmem_caps()
    need = 2 * (H * E_in * tn * 2                 # bf16 weight slab
                + H * tn * 4                      # f32 bias
                + H * B * tn * out_bytes          # stacked output block
                + B * E_in * 2)                   # bf16 rel
    vmem_limit = int(min(max(need + (8 << 20), 32 << 20), limit_cap))

    cost = pl.CostEstimate(
        flops=2 * H * B * E_in * e_pad,
        transcendentals=0,
        bytes_accessed=(n_tiles * H * E_in * tn * 2   # bf16 weights
                        + B * E_in * 2                # bf16 rel
                        + H * e_pad * 4               # f32 biases
                        + H * B * e_pad * out_bytes), # outputs
    )

    return pl.pallas_call(
        _hops_kernel,
        out_shape=jax.ShapeDtypeStruct((H, B, e_pad), out_dtype),
        grid=(n_tiles,),
        in_specs=[
            pl.BlockSpec((B, E_in), lambda n: (0, 0)),              # rel (reused)
            pl.BlockSpec((None, H, E_in, tn), lambda n: (n, 0, 0, 0)),  # contiguous weight slab
            pl.BlockSpec((H, 1, tn), lambda n: (0, 0, n)),          # biases, tile n
        ],
        out_specs=pl.BlockSpec((H, B, tn), lambda n: (0, 0, n)),    # stacked output
        compiler_params=pltpu.CompilerParams(
            dimension_semantics=("parallel",),   # E_out tiles independent (v7x 2 TCs)
            vmem_limit_bytes=vmem_limit,
        ),
        cost_estimate=cost,
    )(rel_c, w_tiled, b_tiled)


class ReformulatorPallas:
    """JAX/Pallas counterpart of the (linear-hops) BaseReformulator."""

    def __init__(self, nb_hops: int, embedding_size: int, key: jax.Array,
                 batch_hint: int = 8):
        self.nb_hops = nb_hops
        self.embedding_size = embedding_size
        k_w, k_b = jax.random.split(key)
        bound = 1.0 / float(embedding_size) ** 0.5  # matches nn.Linear default init
        # PyTorch Linear weight is (out, in); stored pre-transposed as (in, out)
        # so the kernel does a plain row-major matmul.
        w = jax.random.uniform(k_w, (nb_hops, embedding_size, embedding_size),
                               minval=-bound, maxval=bound, dtype=jnp.float32)
        b = jax.random.uniform(k_b, (nb_hops, embedding_size),
                               minval=-bound, maxval=bound, dtype=jnp.float32)
        self.w_f32 = w                       # [H, E_in, E_out] f32 (reference/fallback)
        self.b_f32 = b                       # [H, E_out] f32

        weight_bytes_bf16 = nb_hops * embedding_size * embedding_size * 2
        self._use_pallas = (weight_bytes_bf16 >= _MIN_PALLAS_WEIGHT_BYTES
                            and embedding_size >= _MIN_PALLAS_EOUT)

        if self._use_pallas:
            e_pad = _round_up(embedding_size, 128)
            _, limit_cap = _vmem_caps()
            tn = _pick_tn(e_pad, embedding_size, nb_hops, batch_hint,
                          budget_bytes=limit_cap - (8 << 20))
            n_tiles = e_pad // tn
            pad = e_pad - embedding_size
            w_p = jnp.pad(w, ((0, 0), (0, 0), (0, pad)))
            b_p = jnp.pad(b, ((0, 0), (0, pad)))
            # (n_tiles, H, E_in, tn): each grid step's weight DMA is one
            # contiguous, lane-aligned slab.  bf16 (HBM-bound kernel).
            self.w_tiled = jnp.transpose(
                w_p.reshape(nb_hops, embedding_size, n_tiles, tn),
                (2, 0, 1, 3)).astype(jnp.bfloat16)
            self.b_tiled = b_p.reshape(nb_hops, 1, e_pad)       # f32
            self._e_pad = e_pad
            self._tn = tn

    def forward(self, rel: jax.Array) -> List[jax.Array]:
        if not self._use_pallas:
            # Small-problem fallback: exact f32 nn.Linear semantics in XLA.
            return [jnp.dot(rel, self.w_f32[h], precision="highest") + self.b_f32[h]
                    for h in range(self.nb_hops)]
        stacked = _hops_forward(rel, self.w_tiled, self.b_tiled)   # (H, B, E_pad)
        stacked = stacked[..., :self.embedding_size]
        return [stacked[h] for h in range(self.nb_hops)]

    def prior(self, rel: jax.Array) -> Optional[jax.Array]:
        # Matches BaseReformulator.prior exactly.
        res = None
        return res

    __call__ = forward


def _reference_bf16(rel, w_f32, b_f32):
    """Pure-JAX reference with the same bf16 operand quantization, exact f32 math."""
    rel_q = rel.astype(jnp.bfloat16).astype(jnp.float32)
    w_q = w_f32.astype(jnp.bfloat16).astype(jnp.float32)
    return [jnp.dot(rel_q, w_q[h], precision="highest") + b_f32[h]
            for h in range(w_f32.shape[0])]


if __name__ == "__main__":
    key = jax.random.PRNGKey(0)
    k_p1, k_r1, k_p2, k_r2, k_p3, k_r3 = jax.random.split(key, 6)

    # --- 1) Pallas path, lane-aligned E (grid of >= 2 E_out tiles) ---
    B, E, H = 2, 512, 3
    ref1 = ReformulatorPallas(nb_hops=H, embedding_size=E, key=k_p1)
    rel1 = jax.random.normal(k_r1, (B, E), dtype=jnp.float32)
    hops1 = [jax.block_until_ready(h) for h in ref1(rel1)]
    want1 = _reference_bf16(rel1, ref1.w_f32, ref1.b_f32)
    assert len(hops1) == H
    for got, want in zip(hops1, want1):
        assert got.shape == (B, E)
        assert got.dtype == rel1.dtype
        assert jnp.allclose(got, want, atol=1e-2, rtol=1e-2)

    # --- 2) Pallas path, E not a multiple of 128 (padded E_out, sliced back) ---
    B2, E2, H2 = 2, 448, 3
    ref2 = ReformulatorPallas(nb_hops=H2, embedding_size=E2, key=k_p2)
    rel2 = jax.random.normal(k_r2, (B2, E2), dtype=jnp.float32)
    hops2 = [jax.block_until_ready(h) for h in ref2(rel2)]
    want2 = _reference_bf16(rel2, ref2.w_f32, ref2.b_f32)
    for got, want in zip(hops2, want2):
        assert got.shape == (B2, E2)
        assert jnp.allclose(got, want, atol=1e-2, rtol=1e-2)

    # --- 3) Small-problem fallback (plain XLA f32 matmul) ---
    B3, E3, H3 = 2, 32, 2
    ref3 = ReformulatorPallas(nb_hops=H3, embedding_size=E3, key=k_p3)
    rel3 = jax.random.normal(k_r3, (B3, E3), dtype=jnp.float32)
    hops3 = [jax.block_until_ready(h) for h in ref3(rel3)]
    want3 = [jnp.dot(rel3, ref3.w_f32[h], precision="highest") + ref3.b_f32[h]
             for h in range(H3)]
    for got, want in zip(hops3, want3):
        assert got.shape == (B3, E3)
        assert jnp.allclose(got, want, atol=1e-4, rtol=1e-4)

    # prior() matches the PyTorch source (returns None).
    assert ref1.prior(rel1) is None

    print("KERNEL_OK")
</pallas_src>

<mosaic_0001>
module attributes {stable_mosaic.version = 11 : i64} {
  func.func @_hops_kernel(%arg0: i32, %arg1: memref<2x512xbf16, #tpu.memory_space<vmem>>, %arg2: memref<1x3x512x256xbf16, #tpu.memory_space<vmem>>, %arg3: memref<3x1x256xf32, #tpu.memory_space<vmem>>, %arg4: memref<3x2x256xf32, #tpu.memory_space<vmem>>) attributes {dimension_semantics = [#tpu.dimension_semantics<parallel>], iteration_bounds = array<i64: 2>, scalar_prefetch = 0 : i64, scratch_operands = 0 : i64, tpu.core_type = #tpu.core_type<tc>, window_params = [{pipeline_mode = #tpu.pipeline_mode<synchronous>, transform_indices = @transform_0, window_bounds = array<i64: 2, 512>}, {transform_indices = @transform_1, window_bounds = array<i64: 1, 3, 512, 256>}, {transform_indices = @transform_2, window_bounds = array<i64: 3, 1, 256>}, {transform_indices = @transform_3, window_bounds = array<i64: 3, 2, 256>}]} {
    %c0 = arith.constant 0 : index
    %c0_0 = arith.constant 0 : index
    %0 = vector.load %arg1[%c0, %c0_0] : memref<2x512xbf16, #tpu.memory_space<vmem>>, vector<2x512xbf16>
    %c0_1 = arith.constant 0 : index
    %c0_2 = arith.constant 0 : index
    %c0_3 = arith.constant 0 : index
    %c0_4 = arith.constant 0 : index
    %1 = vector.load %arg2[%c0_1, %c0_2, %c0_3, %c0_4] : memref<1x3x512x256xbf16, #tpu.memory_space<vmem>>, vector<1x1x512x256xbf16>
    %2 = vector.shape_cast %1 : vector<1x1x512x256xbf16> to vector<512x256xbf16>
    %cst = arith.constant dense<0.000000e+00> : vector<2x256xf32>
    %3 = tpu.matmul %0, %2, %cst {dimension_numbers = #tpu.dot_dimension_numbers<[1], [0], [0], [1], [0, 0, 1, 1], [], []>} : vector<2x512xbf16>, vector<512x256xbf16>, vector<2x256xf32> -> vector<2x256xf32>
    %c0_5 = arith.constant 0 : index
    %c0_6 = arith.constant 0 : index
    %c0_7 = arith.constant 0 : index
    %4 = vector.load %arg3[%c0_5, %c0_6, %c0_7] : memref<3x1x256xf32, #tpu.memory_space<vmem>>, vector<1x1x256xf32>
    %5 = vector.shape_cast %4 : vector<1x1x256xf32> to vector<1x256xf32>
    %6 = vector.broadcast %5 : vector<1x256xf32> to vector<2x256xf32>
    %7 = arith.addf %3, %6 : vector<2x256xf32>
    %c0_8 = arith.constant 0 : index
    %c0_9 = arith.constant 0 : index
    %c0_10 = arith.constant 0 : index
    %8 = vector.load %arg4[%c0_8, %c0_9, %c0_10] : memref<3x2x256xf32, #tpu.memory_space<vmem>>, vector<1x2x256xf32>
    %9 = vector.shape_cast %8 : vector<1x2x256xf32> to vector<2x256xf32>
    %10 = vector.shape_cast %7 : vector<2x256xf32> to vector<1x2x256xf32>
    tpu.vector_store %arg4[%c0_8, %c0_9, %c0_10], %10 {strides = array<i32>} : memref<3x2x256xf32, #tpu.memory_space<vmem>>, vector<1x2x256xf32>,
    %c0_11 = arith.constant 0 : index
    %c1 = arith.constant 1 : index
    %c0_12 = arith.constant 0 : index
    %c0_13 = arith.constant 0 : index
    %11 = vector.load %arg2[%c0_11, %c1, %c0_12, %c0_13] : memref<1x3x512x256xbf16, #tpu.memory_space<vmem>>, vector<1x1x512x256xbf16>
    %12 = vector.shape_cast %11 : vector<1x1x512x256xbf16> to vector<512x256xbf16>
    %cst_14 = arith.constant dense<0.000000e+00> : vector<2x256xf32>
    %13 = tpu.matmul %0, %12, %cst_14 {dimension_numbers = #tpu.dot_dimension_numbers<[1], [0], [0], [1], [0, 0, 1, 1], [], []>} : vector<2x512xbf16>, vector<512x256xbf16>, vector<2x256xf32> -> vector<2x256xf32>
    %c1_15 = arith.constant 1 : index
    %c0_16 = arith.constant 0 : index
    %c0_17 = arith.constant 0 : index
    %14 = vector.load %arg3[%c1_15, %c0_16, %c0_17] : memref<3x1x256xf32, #tpu.memory_space<vmem>>, vector<1x1x256xf32>
    %15 = vector.shape_cast %14 : vector<1x1x256xf32> to vector<1x256xf32>
    %16 = vector.broadcast %15 : vector<1x256xf32> to vector<2x256xf32>
    %17 = arith.addf %13, %16 : vector<2x256xf32>
    %c1_18 = arith.constant 1 : index
    %c0_19 = arith.constant 0 : index
    %c0_20 = arith.constant 0 : index
    %18 = vector.load %arg4[%c1_18, %c0_19, %c0_20] : memref<3x2x256xf32, #tpu.memory_space<vmem>>, vector<1x2x256xf32>
    %19 = vector.shape_cast %18 : vector<1x2x256xf32> to vector<2x256xf32>
    %20 = vector.shape_cast %17 : vector<2x256xf32> to vector<1x2x256xf32>
    tpu.vector_store %arg4[%c1_18, %c0_19, %c0_20], %20 {strides = array<i32>} : memref<3x2x256xf32, #tpu.memory_space<vmem>>, vector<1x2x256xf32>,
    %c0_21 = arith.constant 0 : index
    %c2 = arith.constant 2 : index
    %c0_22 = arith.constant 0 : index
    %c0_23 = arith.constant 0 : index
    %21 = vector.load %arg2[%c0_21, %c2, %c0_22, %c0_23] : memref<1x3x512x256xbf16, #tpu.memory_space<vmem>>, vector<1x1x512x256xbf16>
    %22 = vector.shape_cast %21 : vector<1x1x512x256xbf16> to vector<512x256xbf16>
    %cst_24 = arith.constant dense<0.000000e+00> : vector<2x256xf32>
    %23 = tpu.matmul %0, %22, %cst_24 {dimension_numbers = #tpu.dot_dimension_numbers<[1], [0], [0], [1], [0, 0, 1, 1], [], []>} : vector<2x512xbf16>, vector<512x256xbf16>, vector<2x256xf32> -> vector<2x256xf32>
    %c2_25 = arith.constant 2 : index
    %c0_26 = arith.constant 0 : index
    %c0_27 = arith.constant 0 : index
    %24 = vector.load %arg3[%c2_25, %c0_26, %c0_27] : memref<3x1x256xf32, #tpu.memory_space<vmem>>, vector<1x1x256xf32>
    %25 = vector.shape_cast %24 : vector<1x1x256xf32> to vector<1x256xf32>
    %26 = vector.broadcast %25 : vector<1x256xf32> to vector<2x256xf32>
    %27 = arith.addf %23, %26 : vector<2x256xf32>
    %c2_28 = arith.constant 2 : index
    %c0_29 = arith.constant 0 : index
    %c0_30 = arith.constant 0 : index
    %28 = vector.load %arg4[%c2_28, %c0_29, %c0_30] : memref<3x2x256xf32, #tpu.memory_space<vmem>>, vector<1x2x256xf32>
    %29 = vector.shape_cast %28 : vector<1x2x256xf32> to vector<2x256xf32>
    %30 = vector.shape_cast %27 : vector<2x256xf32> to vector<1x2x256xf32>
    tpu.vector_store %arg4[%c2_28, %c0_29, %c0_30], %30 {strides = array<i32>} : memref<3x2x256xf32, #tpu.memory_space<vmem>>, vector<1x2x256xf32>,
    return
  }
  func.func @transform_0(%arg0: i32) -> (i32, i32) {
    %c0_i32 = arith.constant 0 : i32
    %c0_i32_0 = arith.constant 0 : i32
    %c0_i32_1 = arith.constant 0 : i32
    return %c0_i32, %c0_i32_0 : i32, i32
  }
  func.func @transform_1(%arg0: i32) -> (i32, i32, i32, i32) {
    %c0_i32 = arith.constant 0 : i32
    %c0_i32_0 = arith.constant 0 : i32
    %c0_i32_1 = arith.constant 0 : i32
    %c0_i32_2 = arith.constant 0 : i32
    return %arg0, %c0_i32, %c0_i32_0, %c0_i32_1 : i32, i32, i32, i32
  }
  func.func @transform_2(%arg0: i32) -> (i32, i32, i32) {
    %c0_i32 = arith.constant 0 : i32
    %c0_i32_0 = arith.constant 0 : i32
    %c0_i32_1 = arith.constant 0 : i32
    return %c0_i32, %c0_i32_0, %arg0 : i32, i32, i32
  }
  func.func @transform_3(%arg0: i32) -> (i32, i32, i32) {
    %c0_i32 = arith.constant 0 : i32
    %c0_i32_0 = arith.constant 0 : i32
    %c0_i32_1 = arith.constant 0 : i32
    return %c0_i32, %c0_i32_0, %arg0 : i32, i32, i32
  }
}

</mosaic_0001>

<llo_original>
// kernel: _hops_forward.1
$region0: #{_hops_forward.1}
  #allocation0 [shape = 'u32[]', space=smem, size = 0x4, offset = 0x4, fixed_abs, tag = 'smem constant byte address 0x4 - core index']
  #allocation1 [shape = 'u32[144,128]{1,0:T(1,128)}', space=vmem, size = 0x12000, scoped, tag = 'internal scratch']
  %s0 = inlined_call_operand.vmem [shape: bf16[2,512], index: 0, kind: input, shape index: {}]
  %s1 = inlined_call_operand.hbm [shape: bf16[2,3,512,256], index: 1, kind: input, shape index: {}]
  %s2 = inlined_call_operand.hbm [shape: f32[3,1,512], index: 2, kind: input, shape index: {}]
  %s3 = inlined_call_operand.hbm [shape: f32[3,2,512], index: 3, kind: output, shape index: {}]
  %s4 = sld [smem:[#allocation0]]
  $region53: #{_hops_forward.1} parent=0
    _
  %s6 = ssub.s32 1, %s4
  %s7 = scalar_select 0, %s6, %s4
  $region1: #{_hops_forward.1} parent=0
    #allocation2 [shape = 'u8[1572864]{0}', space=vmem, size = 0x180000, scoped, tag = 'input window, operand 1']
    #allocation3 [shape = 's32[2]{0}', space=sflag, size = 0x8, scoped, tag = 'scoped memory for _hops_forward.1']
    #allocation4 [shape = 's32[2]{0}', space=sflag, size = 0x8, scoped, tag = 'scoped memory for _hops_forward.1']
    #allocation5 [shape = 'u8[6144]{0}', space=vmem, size = 0x1800, scoped, tag = 'input window, operand 2']
    #allocation6 [shape = 's32[2]{0}', space=sflag, size = 0x8, scoped, tag = 'scoped memory for _hops_forward.1']
    #allocation7 [shape = 'u8[12288]{0}', space=vmem, size = 0x3000, scoped, tag = 'output window, operand 0']
    %8 = vsyncpa [#allocation3], 0
    %s9 = scalar_lea.sflag [#allocation3], 1
    %10 = vsyncpa %s9, 0
    %11 = vsyncpa [#allocation6], 0
    %s12 = scalar_lea.sflag [#allocation6], 1
    %13 = vsyncpa %s12, 0
    %14 = vsyncpa [#allocation4], 0
    %s15 = scalar_lea.sflag [#allocation4], 1
    %16 = vsyncpa %s15, 0
    loop: start=0, step=1, limit=4
    $region2: #{_hops_forward.1} parent=1 // loop_pre_header
      _
    $region3: #{_hops_forward.1} parent=1 // loop_header
      %s18 = sphi 0, %s22
      %p19 = scmp.ge.s32.totalorder %s18, 4
      %s26 = sphi 0, %s26
      %s28 = sphi 0, %s26
      %s29 = sphi 0, %s28
      %s43 = sphi 0, %s29
      %s49 = sphi 0, %s51
      %s52 = sphi 0, %s49
      %s53 = sphi 0, %s52
      %s69 = sphi 0, %s53
      %s75 = sphi 0, %s77
      %s78 = sphi 0, %s75
      %s79 = sphi 0, %s78
      %s95 = sphi 0, %s79
      %s101 = sphi 0, %s103
      %s104 = sphi 0, %s101
      %s105 = sphi 0, %s104
      %s121 = sphi 0, %s105
    $region4: #{_hops_forward.1} parent=1 // loop_header_branch
      %21 = sbr.rel (%p19) target = $region8
    $region5: #{_hops_forward.1} parent=1 // loop_body
      %s23 = ssub.s32 %s18, 1
      %s24 = ssub.s32 %s18, 2
      %s25 = sadd.s32 %s18, 1
      %s27 = sadd.s32 %s26, 1
      %p30 = scmp.eq.s32.totalorder %s18, 1
      %p31 = scmp.ne.s32.totalorder %s26, %s28
      %p32 = scmp.eq.s32.totalorder %s18, 0
      %p33 = por %p31, %p32
      %p34 = scmp.ne.s32.totalorder %s26, %s28
      %p35 = scmp.eq.s32.totalorder %s23, 1
      %p36 = por %p34, %p35
      %p37 = scmp.ne.s32.totalorder %s28, %s29
      %p38 = scmp.eq.s32.totalorder %s23, 0
      %p39 = por %p37, %p38
      %p40 = scmp.ne.s32.totalorder %s28, %s29
      %p41 = scmp.eq.s32.totalorder %s24, 1
      %p42 = por %p40, %p41
      %p44 = scmp.ne.s32.totalorder %s29, %s43
      %p45 = scmp.eq.s32.totalorder %s24, 0
      %p46 = por %p44, %p45
      %s47 = ssub.s32 %s18, %s25
      %p48 = scmp.eq.s32.totalorder %s47, 0
      %s50 = sadd.s32 %s49, 1
      %s51 = scalar_select %p48, %s49, %s50
      %p54 = pneg %p48
      %p55 = scmp.eq.s32.totalorder %s18, 1
      %p56 = por %p54, %p55
      %p57 = scmp.ne.s32.totalorder %s49, %s52
      %p58 = scmp.eq.s32.totalorder %s18, 0
      %p59 = por %p57, %p58
      %p60 = scmp.ne.s32.totalorder %s49, %s52
      %p61 = scmp.eq.s32.totalorder %s23, 1
      %p62 = por %p60, %p61
      %p63 = scmp.ne.s32.totalorder %s52, %s53
      %p64 = scmp.eq.s32.totalorder %s23, 0
      %p65 = por %p63, %p64
      %p66 = scmp.ne.s32.totalorder %s52, %s53
      %p67 = scmp.eq.s32.totalorder %s24, 1
      %p68 = por %p66, %p67
      %p70 = scmp.ne.s32.totalorder %s53, %s69
      %p71 = scmp.eq.s32.totalorder %s24, 0
      %p72 = por %p70, %p71
      %s73 = ssub.s32 %s18, %s25
      %p74 = scmp.eq.s32.totalorder %s73, 0
      %s76 = sadd.s32 %s75, 1
      %s77 = scalar_select %p74, %s75, %s76
      %p80 = pneg %p74
      %p81 = scmp.eq.s32.totalorder %s18, 1
      %p82 = por %p80, %p81
      %p83 = scmp.ne.s32.totalorder %s75, %s78
      %p84 = scmp.eq.s32.totalorder %s18, 0
      %p85 = por %p83, %p84
      %p86 = scmp.ne.s32.totalorder %s75, %s78
      %p87 = scmp.eq.s32.totalorder %s23, 1
      %p88 = por %p86, %p87
      %p89 = scmp.ne.s32.totalorder %s78, %s79
      %p90 = scmp.eq.s32.totalorder %s23, 0
      %p91 = por %p89, %p90
      %p92 = scmp.ne.s32.totalorder %s78, %s79
      %p93 = scmp.eq.s32.totalorder %s24, 1
      %p94 = por %p92, %p93
      %p96 = scmp.ne.s32.totalorder %s79, %s95
      %p97 = scmp.eq.s32.totalorder %s24, 0
      %p98 = por %p96, %p97
      %s99 = ssub.s32 %s18, %s25
      %p100 = scmp.eq.s32.totalorder %s99, 0
      %s102 = sadd.s32 %s101, 1
      %s103 = scalar_select %p100, %s101, %s102
      %p106 = pneg %p100
      %p107 = scmp.eq.s32.totalorder %s18, 1
      %p108 = por %p106, %p107
      %p109 = scmp.ne.s32.totalorder %s101, %s104
      %p110 = scmp.eq.s32.totalorder %s18, 0
      %p111 = por %p109, %p110
      %p112 = scmp.ne.s32.totalorder %s101, %s104
      %p113 = scmp.eq.s32.totalorder %s23, 1
      %p114 = por %p112, %p113
      %p115 = scmp.ne.s32.totalorder %s104, %s105
      %p116 = scmp.eq.s32.totalorder %s23, 0
      %p117 = por %p115, %p116
      %p118 = scmp.ne.s32.totalorder %s104, %s105
      %p119 = scmp.eq.s32.totalorder %s24, 1
      %p120 = por %p118, %p119
      %p122 = scmp.ne.s32.totalorder %s105, %s121
      %p123 = scmp.eq.s32.totalorder %s24, 0
      %p124 = por %p122, %p123
      %p125 = scmp.le.s32.totalorder 1, %s18
      %p126 = scmp.lt.s32.totalorder %s18, 3
      %p127 = pnand %p125, %p126
      %p128 = pneg %p127
      // Predicated region
      $region9: #{_hops_forward.1} parent=5 // pred_check
        _
      $region10: #{_hops_forward.1} parent=5 // pred_check_branch
        %130 = sbr.rel (%p127) target = $region12
      $region11: #{_hops_forward.1} parent=5 // pred_region
        %s131 = ssub.s32 %s18, 1
        // Predicated region
        $region13: #{_hops_forward.1} parent=11 // pred_check
          %p132 = pneg %p39
        $region14: #{_hops_forward.1} parent=11 // pred_check_branch
          %134 = sbr.rel (%p132) target = $region16
        $region15: #{_hops_forward.1} parent=11 // pred_region
          _
        $region16: #{_hops_forward.1} parent=11 // pred_fallthru
          _
      $region12: #{_hops_forward.1} parent=5 // pred_fallthru
        _
      %p135 = scmp.lt.s32.totalorder %s18, 2
      // Predicated region
      $region17: #{_hops_forward.1} parent=5 // pred_check
        %p136 = pneg %p135
      $region18: #{_hops_forward.1} parent=5 // pred_check_branch
        %138 = sbr.rel (%p136) target = $region20
      $region19: #{_hops_forward.1} parent=5 // pred_region
        // Predicated region
        $region21: #{_hops_forward.1} parent=19 // pred_check
          %p139 = pneg %p59
        $region22: #{_hops_forward.1} parent=19 // pred_check_branch
          %141 = sbr.rel (%p139) target = $region24
        $region23: #{_hops_forward.1} parent=19 // pred_region
          %s142 = sand.u32 %s49, 1
          %s143 = scalar_lea.sflag [#allocation3], %s142
          %s144 = sand.u32 %s49, 1
          %s145 = smul.addr %s144, 1536
          %s146 = scalar_lea.vmem [#allocation2], %s145
          %s148 = ssub.s32 24576, 24576
          %149 = vsyncadd %s143, %s148
          %s150 = smul.addr %s18, 384
          %s151 = smul.addr %s150, 64
          %s152 = scalar_lea.hbm %s1, %s151
          %s153 = sshll.u32 %s146, 4
          %s154 = int_to_ptr.vmem [resolvable:$true] %s153
          %159 = dma.hbm_to_vmem [thread:$0]  %s152, 24576, %s154, %s143, 128, 128, 8
        $region24: #{_hops_forward.1} parent=19 // pred_fallthru
          _
        // Predicated region
        $region25: #{_hops_forward.1} parent=19 // pred_check
          %p160 = pneg %p85
        $region26: #{_hops_forward.1} parent=19 // pred_check_branch
          %162 = sbr.rel (%p160) target = $region28
        $region27: #{_hops_forward.1} parent=19 // pred_region
          %s163 = sand.u32 %s75, 1
          %s164 = scalar_lea.sflag [#allocation6], %s163
          %s165 = sand.u32 %s75, 1
          %s166 = smul.addr %s165, 6
          %s167 = scalar_lea.vmem [#allocation5], %s166
          %s168 = smul.u32 2, %s18
          %s170 = ssub.s32 96, 96
          %171 = vsyncadd %s164, %s170
          %s172 = smul.addr %s168, 16
          %s173 = scalar_lea.hbm %s2, %s172
          %s174 = sshll.u32 %s167, 4
          %s175 = int_to_ptr.vmem [resolvable:$true] %s174
          %180 = dma.hbm_to_vmem [thread:$0]  %s173, 96, %s175, %s164, 64, 32, 2
        $region28: #{_hops_forward.1} parent=19 // pred_fallthru
          _
      $region20: #{_hops_forward.1} parent=5 // pred_fallthru
        _
      %p181 = scmp.le.s32.totalorder 1, %s18
      %p182 = scmp.lt.s32.totalorder %s18, 3
      %p183 = pnand %p181, %p182
      %p184 = pneg %p183
      // Predicated region
      $region29: #{_hops_forward.1} parent=5 // pred_check
        _
      $region30: #{_hops_forward.1} parent=5 // pred_check_branch
        %186 = sbr.rel (%p183) target = $region32
      $region31: #{_hops_forward.1} parent=5 // pred_region
        %s187 = ssub.s32 %s18, 1
        %s188 = sand.u32 %s52, 1
        %s189 = scalar_lea.sflag [#allocation3], %s188
        %s190 = sand.u32 %s52, 1
        %s191 = smul.addr %s190, 1536
        %s192 = scalar_lea.vmem [#allocation2], %s191
        // Predicated region
        $region33: #{_hops_forward.1} parent=31 // pred_check
          %p193 = pneg %p65
        $region34: #{_hops_forward.1} parent=31 // pred_check_branch
          %195 = sbr.rel (%p193) target = $region36
        $region35: #{_hops_forward.1} parent=31 // pred_region
          %196 = dma.done %s189, 24576
        $region36: #{_hops_forward.1} parent=31 // pred_fallthru
          _
        %s197 = sand.u32 %s78, 1
        %s198 = scalar_lea.sflag [#allocation6], %s197
        %s199 = sand.u32 %s78, 1
        %s200 = smul.addr %s199, 6
        %s201 = scalar_lea.vmem [#allocation5], %s200
        // Predicated region
        $region37: #{_hops_forward.1} parent=31 // pred_check
          %p202 = pneg %p91
        $region38: #{_hops_forward.1} parent=31 // pred_check_branch
          %204 = sbr.rel (%p202) target = $region40
        $region39: #{_hops_forward.1} parent=31 // pred_region
          %205 = dma.done %s198, 96
        $region40: #{_hops_forward.1} parent=31 // pred_fallthru
          _
        %p206 = pneg %p39
        %p207 = pneg %p36
        %s208 = sand.u32 %s52, 1
        %s209 = scalar_lea.sflag [#allocation3], %s208
        %s210 = sand.u32 %s52, 1
        %s211 = smul.addr %s210, 1536
        %s212 = scalar_lea.vmem [#allocation2], %s211
        %p213 = pneg %p65
        %p214 = pneg %p62
        %s215 = sand.u32 %s78, 1
        %s216 = scalar_lea.sflag [#allocation6], %s215
        %s217 = sand.u32 %s78, 1
        %s218 = smul.addr %s217, 6
        %s219 = scalar_lea.vmem [#allocation5], %s218
        %p220 = pneg %p91
        %p221 = pneg %p88
        %p222 = pneg %p117
        %p223 = pneg %p114
        %s224 = sand.u32 %s104, 1
        %s225 = scalar_lea.sflag [#allocation4], %s224
        %s226 = sand.u32 %s104, 1
        %s227 = smul.addr %s226, 12
        %s228 = scalar_lea.vmem [#allocation7], %s227
        %s229 = smul.u32 2, %s23
        %s230 = smul.u32 2, %s23
        %v231 = vld [vmem:[%s0] sm:$0xf]
        %v232 = vld [vmem:[%s192] sm:$0xff]
        %v233 = vld [vmem:[%s192 + $0x8] sm:$0xff]
        %v234 = vld [vmem:[%s192 + $0x10] sm:$0xff]
        %v235 = vld [vmem:[%s192 + $0x18] sm:$0xff]
        %v236 = vld [vmem:[%s192 + $0x20] sm:$0xff]
        %v237 = vld [vmem:[%s192 + $0x28] sm:$0xff]
        %v238 = vld [vmem:[%s192 + $0x30] sm:$0xff]
        %v239 = vld [vmem:[%s192 + $0x38] sm:$0xff]
        %v240 = vld [vmem:[%s192 + $0x40] sm:$0xff]
        %v241 = vld [vmem:[%s192 + $0x48] sm:$0xff]
        %v242 = vld [vmem:[%s192 + $0x50] sm:$0xff]
        %v243 = vld [vmem:[%s192 + $0x58] sm:$0xff]
        %v244 = vld [vmem:[%s192 + $0x60] sm:$0xff]
        %v245 = vld [vmem:[%s192 + $0x68] sm:$0xff]
        %v246 = vld [vmem:[%s192 + $0x70] sm:$0xff]
        %v247 = vld [vmem:[%s192 + $0x78] sm:$0xff]
        %v248 = vld [vmem:[%s192 + $0x80] sm:$0xff]
        %v249 = vld [vmem:[%s192 + $0x88] sm:$0xff]
        %v250 = vld [vmem:[%s192 + $0x90] sm:$0xff]
        %v251 = vld [vmem:[%s192 + $0x98] sm:$0xff]
        %v252 = vld [vmem:[%s192 + $0xa0] sm:$0xff]
        %v253 = vld [vmem:[%s192 + $0xa8] sm:$0xff]
        %v254 = vld [vmem:[%s192 + $0xb0] sm:$0xff]
        %v255 = vld [vmem:[%s192 + $0xb8] sm:$0xff]
        %v256 = vld [vmem:[%s192 + $0xc0] sm:$0xff]
        %v257 = vld [vmem:[%s192 + $0xc8] sm:$0xff]
        %v258 = vld [vmem:[%s192 + $0xd0] sm:$0xff]
        %v259 = vld [vmem:[%s192 + $0xd8] sm:$0xff]
        %v260 = vld [vmem:[%s192 + $0xe0] sm:$0xff]
        %v261 = vld [vmem:[%s192 + $0xe8] sm:$0xff]
        %v262 = vld [vmem:[%s192 + $0xf0] sm:$0xff]
        %v263 = vld [vmem:[%s192 + $0xf8] sm:$0xff]
        %v264 = vld [vmem:[%s192 + $0x100] sm:$0xff]
        %v265 = vld [vmem:[%s192 + $0x108] sm:$0xff]
        %v266 = vld [vmem:[%s192 + $0x110] sm:$0xff]
        %v267 = vld [vmem:[%s192 + $0x118] sm:$0xff]
        %v268 = vld [vmem:[%s192 + $0x120] sm:$0xff]
        %v269 = vld [vmem:[%s192 + $0x128] sm:$0xff]
        %v270 = vld [vmem:[%s192 + $0x130] sm:$0xff]
        %v271 = vld [vmem:[%s192 + $0x138] sm:$0xff]
        %v272 = vld [vmem:[%s192 + $0x140] sm:$0xff]
        %v273 = vld [vmem:[%s192 + $0x148] sm:$0xff]
        %v274 = vld [vmem:[%s192 + $0x150] sm:$0xff]
        %v275 = vld [vmem:[%s192 + $0x158] sm:$0xff]
        %v276 = vld [vmem:[%s192 + $0x160] sm:$0xff]
        %v277 = vld [vmem:[%s192 + $0x168] sm:$0xff]
        %v278 = vld [vmem:[%s192 + $0x170] sm:$0xff]
        %v279 = vld [vmem:[%s192 + $0x178] sm:$0xff]
        %v280 = vld [vmem:[%s192 + $0x180] sm:$0xff]
        %v281 = vld [vmem:[%s192 + $0x188] sm:$0xff]
        %v282 = vld [vmem:[%s192 + $0x190] sm:$0xff]
        %v283 = vld [vmem:[%s192 + $0x198] sm:$0xff]
        %v284 = vld [vmem:[%s192 + $0x1a0] sm:$0xff]
        %v285 = vld [vmem:[%s192 + $0x1a8] sm:$0xff]
        %v286 = vld [vmem:[%s192 + $0x1b0] sm:$0xff]
        %v287 = vld [vmem:[%s192 + $0x1b8] sm:$0xff]
        %v288 = vld [vmem:[%s192 + $0x1c0] sm:$0xff]
        %v289 = vld [vmem:[%s192 + $0x1c8] sm:$0xff]
        %v290 = vld [vmem:[%s192 + $0x1d0] sm:$0xff]
        %v291 = vld [vmem:[%s192 + $0x1d8] sm:$0xff]
        %v292 = vld [vmem:[%s192 + $0x1e0] sm:$0xff]
        %v293 = vld [vmem:[%s192 + $0x1e8] sm:$0xff]
        %v294 = vld [vmem:[%s192 + $0x1f0] sm:$0xff]
        %v295 = vld [vmem:[%s192 + $0x1f8] sm:$0xff]
        %v296 = vld [vmem:[%s201] sm:$0x3]
        %v298 = vlaneseq
        %v299 = vshrl.u32 %v298, 7
        %v300 = vsub.s32 0, %v299
        %v301 = vrot.slane %v296, %v300
        %v302 = vlaneseq
        %v303 = vshrl.u32 %v302, 7
        %v304 = vsub.s32 1, %v303
        %v305 = vrot.slane %v296, %v304
        %v310 = vunpack.c.l.s4 1966171168
        %v311 = vunpack.c.0.s8 %v310
        %v312 = vlaneseq
        %v313 = vshrl.u32 %v312, 7
        %v314 = vsub.s32 %v311, %v313
        %v315 = vrot.slane %v231, %v314
        %v316 = vcombine.high %v315, %v315
        %v318 = vunpack.c.l.s4 1966171168
        %v319 = vunpack.c.0.s8 %v318
        %v320 = vlaneseq
        %v321 = vshrl.u32 %v320, 7
        %v322 = vsub.s32 %v319, %v321
        %v323 = vrot.slane %v315, %v322
        %v325 = vunpack.c.l.s4 1966171168
        %v326 = vunpack.c.0.s8 %v325
        %v327 = vlaneseq
        %v328 = vshrl.u32 %v327, 7
        %v329 = vsub.s32 %v326, %v328
        %v330 = vrot.slane %v316, %v329
        %v331 = vcombine.high %v323, %v323
        %v332 = vcombine.high %v330, %v330
        %v401 = vunpack.c.l.b16 %v232
        %v402 = vunpack.c.h.b16 %v232
        %v403 = vunpack.c.l.b16 %v233
        %v404 = vunpack.c.h.b16 %v233
        %v405 = vunpack.c.l.b16 %v234
        %v406 = vunpack.c.h.b16 %v234
        %v407 = vunpack.c.l.b16 %v235
        %v408 = vunpack.c.h.b16 %v235
        %v409 = vunpack.c.l.b16 %v236
        %v410 = vunpack.c.h.b16 %v236
        %v411 = vunpack.c.l.b16 %v237
        %v412 = vunpack.c.h.b16 %v237
        %v413 = vunpack.c.l.b16 %v238
        %v414 = vunpack.c.h.b16 %v238
        %v415 = vunpack.c.l.b16 %v239
        %v416 = vunpack.c.h.b16 %v239
        %v417 = vunpack.c.l.b16 %v240
        %v418 = vunpack.c.h.b16 %v240
        %v419 = vunpack.c.l.b16 %v241
        %v420 = vunpack.c.h.b16 %v241
        %v421 = vunpack.c.l.b16 %v242
        %v422 = vunpack.c.h.b16 %v242
        %v423 = vunpack.c.l.b16 %v243
        %v424 = vunpack.c.h.b16 %v243
        %v425 = vunpack.c.l.b16 %v244
        %v426 = vunpack.c.h.b16 %v244
        %v427 = vunpack.c.l.b16 %v245
        %v428 = vunpack.c.h.b16 %v245
        %v429 = vunpack.c.l.b16 %v246
        %v430 = vunpack.c.h.b16 %v246
        %v431 = vunpack.c.l.b16 %v247
        %v432 = vunpack.c.h.b16 %v247
        %v433 = vunpack.c.l.b16 %v248
        %v434 = vunpack.c.h.b16 %v248
        %v435 = vunpack.c.l.b16 %v249
        %v436 = vunpack.c.h.b16 %v249
        %v437 = vunpack.c.l.b16 %v250
        %v438 = vunpack.c.h.b16 %v250
        %v439 = vunpack.c.l.b16 %v251
        %v440 = vunpack.c.h.b16 %v251
        %v441 = vunpack.c.l.b16 %v252
        %v442 = vunpack.c.h.b16 %v252
        %v443 = vunpack.c.l.b16 %v253
        %v444 = vunpack.c.h.b16 %v253
        %v445 = vunpack.c.l.b16 %v254
        %v446 = vunpack.c.h.b16 %v254
        %v447 = vunpack.c.l.b16 %v255
        %v448 = vunpack.c.h.b16 %v255
        %v449 = vunpack.c.l.b16 %v256
        %v450 = vunpack.c.h.b16 %v256
        %v451 = vunpack.c.l.b16 %v257
        %v452 = vunpack.c.h.b16 %v257
        %v453 = vunpack.c.l.b16 %v258
        %v454 = vunpack.c.h.b16 %v258
        %v455 = vunpack.c.l.b16 %v259
        %v456 = vunpack.c.h.b16 %v259
        %v457 = vunpack.c.l.b16 %v260
        %v458 = vunpack.c.h.b16 %v260
        %v459 = vunpack.c.l.b16 %v261
        %v460 = vunpack.c.h.b16 %v261
        %v461 = vunpack.c.l.b16 %v262
        %v462 = vunpack.c.h.b16 %v262
        %v463 = vunpack.c.l.b16 %v263
        %v464 = vunpack.c.h.b16 %v263
        %v465 = vunpack.c.l.b16 %v264
        %v466 = vunpack.c.h.b16 %v264
        %v467 = vunpack.c.l.b16 %v265
        %v468 = vunpack.c.h.b16 %v265
        %v469 = vunpack.c.l.b16 %v266
        %v470 = vunpack.c.h.b16 %v266
        %v471 = vunpack.c.l.b16 %v267
        %v472 = vunpack.c.h.b16 %v267
        %v473 = vunpack.c.l.b16 %v268
        %v474 = vunpack.c.h.b16 %v268
        %v475 = vunpack.c.l.b16 %v269
        %v476 = vunpack.c.h.b16 %v269
        %v477 = vunpack.c.l.b16 %v270
        %v478 = vunpack.c.h.b16 %v270
        %v479 = vunpack.c.l.b16 %v271
        %v480 = vunpack.c.h.b16 %v271
        %v481 = vunpack.c.l.b16 %v272
        %v482 = vunpack.c.h.b16 %v272
        %v483 = vunpack.c.l.b16 %v273
        %v484 = vunpack.c.h.b16 %v273
        %v485 = vunpack.c.l.b16 %v274
        %v486 = vunpack.c.h.b16 %v274
        %v487 = vunpack.c.l.b16 %v275
        %v488 = vunpack.c.h.b16 %v275
        %v489 = vunpack.c.l.b16 %v276
        %v490 = vunpack.c.h.b16 %v276
        %v491 = vunpack.c.l.b16 %v277
        %v492 = vunpack.c.h.b16 %v277
        %v493 = vunpack.c.l.b16 %v278
        %v494 = vunpack.c.h.b16 %v278
        %v495 = vunpack.c.l.b16 %v279
        %v496 = vunpack.c.h.b16 %v279
        %v497 = vunpack.c.l.b16 %v280
        %v498 = vunpack.c.h.b16 %v280
        %v499 = vunpack.c.l.b16 %v281
        %v500 = vunpack.c.h.b16 %v281
        %v501 = vunpack.c.l.b16 %v282
        %v502 = vunpack.c.h.b16 %v282
        %v503 = vunpack.c.l.b16 %v283
        %v504 = vunpack.c.h.b16 %v283
        %v505 = vunpack.c.l.b16 %v284
        %v506 = vunpack.c.h.b16 %v284
        %v507 = vunpack.c.l.b16 %v285
        %v508 = vunpack.c.h.b16 %v285
        %v509 = vunpack.c.l.b16 %v286
        %v510 = vunpack.c.h.b16 %v286
        %v511 = vunpack.c.l.b16 %v287
        %v512 = vunpack.c.h.b16 %v287
        %v513 = vunpack.c.l.b16 %v288
        %v514 = vunpack.c.h.b16 %v288
        %v515 = vunpack.c.l.b16 %v289
        %v516 = vunpack.c.h.b16 %v289
        %v517 = vunpack.c.l.b16 %v290
        %v518 = vunpack.c.h.b16 %v290
        %v519 = vunpack.c.l.b16 %v291
        %v520 = vunpack.c.h.b16 %v291
        %v521 = vunpack.c.l.b16 %v292
        %v522 = vunpack.c.h.b16 %v292
        %v523 = vunpack.c.l.b16 %v293
        %v524 = vunpack.c.h.b16 %v293
        %v525 = vunpack.c.l.b16 %v294
        %v526 = vunpack.c.h.b16 %v294
        %v527 = vunpack.c.l.b16 %v295
        %v528 = vunpack.c.h.b16 %v295
        %v529 = vpack.c.b16 %v403, %v401
        %v530 = vpack.c.b16 %v404, %v402
        %v531 = vpack.c.b16 %v407, %v405
        %v532 = vpack.c.b16 %v408, %v406
        %v533 = vpack.c.b16 %v411, %v409
        %v534 = vpack.c.b16 %v412, %v410
        %v535 = vpack.c.b16 %v415, %v413
        %v536 = vpack.c.b16 %v416, %v414
        %v537 = vpack.c.b16 %v419, %v417
        %v538 = vpack.c.b16 %v420, %v418
        %v539 = vpack.c.b16 %v423, %v421
        %v540 = vpack.c.b16 %v424, %v422
        %v541 = vpack.c.b16 %v427, %v425
        %v542 = vpack.c.b16 %v428, %v426
        %v543 = vpack.c.b16 %v431, %v429
        %v544 = vpack.c.b16 %v432, %v430
        %v545 = vpack.c.b16 %v435, %v433
        %v546 = vpack.c.b16 %v436, %v434
        %v547 = vpack.c.b16 %v439, %v437
        %v548 = vpack.c.b16 %v440, %v438
        %v549 = vpack.c.b16 %v443, %v441
        %v550 = vpack.c.b16 %v444, %v442
        %v551 = vpack.c.b16 %v447, %v445
        %v552 = vpack.c.b16 %v448, %v446
        %v553 = vpack.c.b16 %v451, %v449
        %v554 = vpack.c.b16 %v452, %v450
        %v555 = vpack.c.b16 %v455, %v453
        %v556 = vpack.c.b16 %v456, %v454
        %v557 = vpack.c.b16 %v459, %v457
        %v558 = vpack.c.b16 %v460, %v458
        %v559 = vpack.c.b16 %v463, %v461
        %v560 = vpack.c.b16 %v464, %v462
        %v561 = vpack.c.b16 %v467, %v465
        %v562 = vpack.c.b16 %v468, %v466
        %v563 = vpack.c.b16 %v471, %v469
        %v564 = vpack.c.b16 %v472, %v470
        %v565 = vpack.c.b16 %v475, %v473
        %v566 = vpack.c.b16 %v476, %v474
        %v567 = vpack.c.b16 %v479, %v477
        %v568 = vpack.c.b16 %v480, %v478
        %v569 = vpack.c.b16 %v483, %v481
        %v570 = vpack.c.b16 %v484, %v482
        %v571 = vpack.c.b16 %v487, %v485
        %v572 = vpack.c.b16 %v488, %v486
        %v573 = vpack.c.b16 %v491, %v489
        %v574 = vpack.c.b16 %v492, %v490
        %v575 = vpack.c.b16 %v495, %v493
        %v576 = vpack.c.b16 %v496, %v494
        %v577 = vpack.c.b16 %v499, %v497
        %v578 = vpack.c.b16 %v500, %v498
        %v579 = vpack.c.b16 %v503, %v501
        %v580 = vpack.c.b16 %v504, %v502
        %v581 = vpack.c.b16 %v507, %v505
        %v582 = vpack.c.b16 %v508, %v506
        %v583 = vpack.c.b16 %v511, %v509
        %v584 = vpack.c.b16 %v512, %v510
        %v585 = vpack.c.b16 %v515, %v513
        %v586 = vpack.c.b16 %v516, %v514
        %v587 = vpack.c.b16 %v519, %v517
        %v588 = vpack.c.b16 %v520, %v518
        %v589 = vpack.c.b16 %v523, %v521
        %v590 = vpack.c.b16 %v524, %v522
        %v591 = vpack.c.b16 %v527, %v525
        %v592 = vpack.c.b16 %v528, %v526
        %657 = vmatprep.subr.bf16.mxu0 %v530
        %658 = vmatpush1.bf16.msra.mxu0 %v529
        %659 = vmatprep.subr.bf16.mxu0 %v532
        %660 = vmatpush1.bf16.msra.mxu0 %v531
        %661 = vmatprep.subr.bf16.mxu0 %v534
        %662 = vmatpush1.bf16.msra.mxu0 %v533
        %663 = vmatprep.subr.bf16.mxu0 %v536
        %664 = vmatpush1.bf16.msra.mxu0 %v535
        %665 = vmatprep.subr.bf16.mxu0 %v538
        %666 = vmatpush1.bf16.msra.mxu0 %v537
        %667 = vmatprep.subr.bf16.mxu0 %v540
        %668 = vmatpush1.bf16.msra.mxu0 %v539
        %669 = vmatprep.subr.bf16.mxu0 %v542
        %670 = vmatpush1.bf16.msra.mxu0 %v541
        %671 = vmatprep.subr.bf16.mxu0 %v544
        %672 = vmatpush1.bf16.msra.mxu0 %v543
        %673 = vmatprep.subr.bf16.mxu0 %v546
        %674 = vmatpush1.bf16.msra.mxu0 %v545
        %675 = vmatprep.subr.bf16.mxu0 %v548
        %676 = vmatpush1.bf16.msra.mxu0 %v547
        %677 = vmatprep.subr.bf16.mxu0 %v550
        %678 = vmatpush1.bf16.msra.mxu0 %v549
        %679 = vmatprep.subr.bf16.mxu0 %v552
        %680 = vmatpush1.bf16.msra.mxu0 %v551
        %681 = vmatprep.subr.bf16.mxu0 %v554
        %682 = vmatpush1.bf16.msra.mxu0 %v553
        %683 = vmatprep.subr.bf16.mxu0 %v556
        %684 = vmatpush1.bf16.msra.mxu0 %v555
        %685 = vmatprep.subr.bf16.mxu0 %v558
        %686 = vmatpush1.bf16.msra.mxu0 %v557
        %687 = vmatprep.subr.bf16.mxu0 %v560
        %688 = vmatpush1.bf16.msra.mxu0 %v559
        %689 = vmatprep.mubr.bf16.mxu0 %v330
        %690 = vmatmul.mubr.bf16.gmra.mrb[0].mxu0 %v323
        %v691 = vpop.f32.mrb[0].mxu0
        %v692 = vadd.f32 %v301, %v691
        %v693 = vpop.f32.mrb[0].mxu0
        %v694 = vadd.f32 %v305, %v693
        %v695 = vpop.f32.mrb[0].mxu0
        %v696 = vpop.f32.mrb[0].mxu0
        %697 = vdwg.mxu0
        %698 = vmatprep.subr.bf16.mxu0 %v562
        %699 = vmatpush1.bf16.msra.mxu0 %v561
        %700 = vmatprep.subr.bf16.mxu0 %v564
        %701 = vmatpush1.bf16.msra.mxu0 %v563
        %702 = vmatprep.subr.bf16.mxu0 %v566
        %703 = vmatpush1.bf16.msra.mxu0 %v565
        %704 = vmatprep.subr.bf16.mxu0 %v568
        %705 = vmatpush1.bf16.msra.mxu0 %v567
        %706 = vmatprep.subr.bf16.mxu0 %v570
        %707 = vmatpush1.bf16.msra.mxu0 %v569
        %708 = vmatprep.subr.bf16.mxu0 %v572
        %709 = vmatpush1.bf16.msra.mxu0 %v571
        %710 = vmatprep.subr.bf16.mxu0 %v574
        %711 = vmatpush1.bf16.msra.mxu0 %v573
        %712 = vmatprep.subr.bf16.mxu0 %v576
        %713 = vmatpush1.bf16.msra.mxu0 %v575
        %714 = vmatprep.subr.bf16.mxu0 %v578
        %715 = vmatpush1.bf16.msra.mxu0 %v577
        %716 = vmatprep.subr.bf16.mxu0 %v580
        %717 = vmatpush1.bf16.msra.mxu0 %v579
        %718 = vmatprep.subr.bf16.mxu0 %v582
        %719 = vmatpush1.bf16.msra.mxu0 %v581
        %720 = vmatprep.subr.bf16.mxu0 %v584
        %721 = vmatpush1.bf16.msra.mxu0 %v583
        %722 = vmatprep.subr.bf16.mxu0 %v586
        %723 = vmatpush1.bf16.msra.mxu0 %v585
        %724 = vmatprep.subr.bf16.mxu0 %v588
        %725 = vmatpush1.bf16.msra.mxu0 %v587
        %726 = vmatprep.subr.bf16.mxu0 %v590
        %727 = vmatpush1.bf16.msra.mxu0 %v589
        %728 = vmatprep.subr.bf16.mxu0 %v592
        %729 = vmatpush1.bf16.msra.mxu0 %v591
        %730 = vmatprep.mubr.bf16.mxu0 %v332
        %731 = vmatmul.mubr.bf16.gmra.mrb[0].mxu0 %v331
        %v732 = vpop.f32.mrb[0].mxu0
        %v733 = vadd.f32 %v692, %v732
        %v734 = vpop.f32.mrb[0].mxu0
        %v735 = vadd.f32 %v694, %v734
        %v736 = vpop.f32.mrb[0].mxu0
        %v737 = vpop.f32.mrb[0].mxu0
        %738 = vdwg.mxu0
        %v741 = vcombine.low %v733, %v735
        %v743 = vunpack.c.l.s4 1983009808
        %v744 = vunpack.c.0.s8 %v743
        %v745 = vlaneseq
        %v746 = vshrl.u32 %v745, 7
        %v747 = vsub.s32 %v744, %v746
        %v748 = vrot.slane %v741, %v747
        %750 = vst [vmem:[%s228] sm:$0xf] %v748
        %s751 = scalar_lea.vmem %s192, 512 [#allocation2]
        %v752 = vld [vmem:[%s751] sm:$0xff]
        %v753 = vld [vmem:[%s751 + $0x8] sm:$0xff]
        %v754 = vld [vmem:[%s751 + $0x10] sm:$0xff]
        %v755 = vld [vmem:[%s751 + $0x18] sm:$0xff]
        %v756 = vld [vmem:[%s751 + $0x20] sm:$0xff]
        %v757 = vld [vmem:[%s751 + $0x28] sm:$0xff]
        %v758 = vld [vmem:[%s751 + $0x30] sm:$0xff]
        %v759 = vld [vmem:[%s751 + $0x38] sm:$0xff]
        %v760 = vld [vmem:[%s751 + $0x40] sm:$0xff]
        %v761 = vld [vmem:[%s751 + $0x48] sm:$0xff]
        %v762 = vld [vmem:[%s751 + $0x50] sm:$0xff]
        %v763 = vld [vmem:[%s751 + $0x58] sm:$0xff]
        %v764 = vld [vmem:[%s751 + $0x60] sm:$0xff]
        %v765 = vld [vmem:[%s751 + $0x68] sm:$0xff]
        %v766 = vld [vmem:[%s751 + $0x70] sm:$0xff]
        %v767 = vld [vmem:[%s751 + $0x78] sm:$0xff]
        %v768 = vld [vmem:[%s751 + $0x80] sm:$0xff]
        %v769 = vld [vmem:[%s751 + $0x88] sm:$0xff]
        %v770 = vld [vmem:[%s751 + $0x90] sm:$0xff]
        %v771 = vld [vmem:[%s751 + $0x98] sm:$0xff]
        %v772 = vld [vmem:[%s751 + $0xa0] sm:$0xff]
        %v773 = vld [vmem:[%s751 + $0xa8] sm:$0xff]
        %v774 = vld [vmem:[%s751 + $0xb0] sm:$0xff]
        %v775 = vld [vmem:[%s751 + $0xb8] sm:$0xff]
        %v776 = vld [vmem:[%s751 + $0xc0] sm:$0xff]
        %v777 = vld [vmem:[%s751 + $0xc8] sm:$0xff]
        %v778 = vld [vmem:[%s751 + $0xd0] sm:$0xff]
        %v779 = vld [vmem:[%s751 + $0xd8] sm:$0xff]
        %v780 = vld [vmem:[%s751 + $0xe0] sm:$0xff]
        %v781 = vld [vmem:[%s751 + $0xe8] sm:$0xff]
        %v782 = vld [vmem:[%s751 + $0xf0] sm:$0xff]
        %v783 = vld [vmem:[%s751 + $0xf8] sm:$0xff]
        %v784 = vld [vmem:[%s751 + $0x100] sm:$0xff]
        %v785 = vld [vmem:[%s751 + $0x108] sm:$0xff]
        %v786 = vld [vmem:[%s751 + $0x110] sm:$0xff]
        %v787 = vld [vmem:[%s751 + $0x118] sm:$0xff]
        %v788 = vld [vmem:[%s751 + $0x120] sm:$0xff]
        %v789 = vld [vmem:[%s751 + $0x128] sm:$0xff]
        %v790 = vld [vmem:[%s751 + $0x130] sm:$0xff]
        %v791 = vld [vmem:[%s751 + $0x138] sm:$0xff]
        %v792 = vld [vmem:[%s751 + $0x140] sm:$0xff]
        %v793 = vld [vmem:[%s751 + $0x148] sm:$0xff]
        %v794 = vld [vmem:[%s751 + $0x150] sm:$0xff]
        %v795 = vld [vmem:[%s751 + $0x158] sm:$0xff]
        %v796 = vld [vmem:[%s751 + $0x160] sm:$0xff]
        %v797 = vld [vmem:[%s751 + $0x168] sm:$0xff]
        %v798 = vld [vmem:[%s751 + $0x170] sm:$0xff]
        %v799 = vld [vmem:[%s751 + $0x178] sm:$0xff]
        %v800 = vld [vmem:[%s751 + $0x180] sm:$0xff]
        %v801 = vld [vmem:[%s751 + $0x188] sm:$0xff]
        %v802 = vld [vmem:[%s751 + $0x190] sm:$0xff]
        %v803 = vld [vmem:[%s751 + $0x198] sm:$0xff]
        %v804 = vld [vmem:[%s751 + $0x1a0] sm:$0xff]
        %v805 = vld [vmem:[%s751 + $0x1a8] sm:$0xff]
        %v806 = vld [vmem:[%s751 + $0x1b0] sm:$0xff]
        %v807 = vld [vmem:[%s751 + $0x1b8] sm:$0xff]
        %v808 = vld [vmem:[%s751 + $0x1c0] sm:$0xff]
        %v809 = vld [vmem:[%s751 + $0x1c8] sm:$0xff]
        %v810 = vld [vmem:[%s751 + $0x1d0] sm:$0xff]
        %v811 = vld [vmem:[%s751 + $0x1d8] sm:$0xff]
        %v812 = vld [vmem:[%s751 + $0x1e0] sm:$0xff]
        %v813 = vld [vmem:[%s751 + $0x1e8] sm:$0xff]
        %v814 = vld [vmem:[%s751 + $0x1f0] sm:$0xff]
        %v815 = vld [vmem:[%s751 + $0x1f8] sm:$0xff]
        %s816 = scalar_lea.vmem %s201, 2 [#allocation5]
        %v817 = vld [vmem:[%s816] sm:$0x3]
        %v819 = vlaneseq
        %v820 = vshrl.u32 %v819, 7
        %v821 = vsub.s32 0, %v820
        %v822 = vrot.slane %v817, %v821
        %v823 = vlaneseq
        %v824 = vshrl.u32 %v823, 7
        %v825 = vsub.s32 1, %v824
        %v826 = vrot.slane %v817, %v825
        %v893 = vunpack.c.l.b16 %v752
        %v894 = vunpack.c.h.b16 %v752
        %v895 = vunpack.c.l.b16 %v753
        %v896 = vunpack.c.h.b16 %v753
        %v897 = vunpack.c.l.b16 %v754
        %v898 = vunpack.c.h.b16 %v754
        %v899 = vunpack.c.l.b16 %v755
        %v900 = vunpack.c.h.b16 %v755
        %v901 = vunpack.c.l.b16 %v756
        %v902 = vunpack.c.h.b16 %v756
        %v903 = vunpack.c.l.b16 %v757
        %v904 = vunpack.c.h.b16 %v757
        %v905 = vunpack.c.l.b16 %v758
        %v906 = vunpack.c.h.b16 %v758
        %v907 = vunpack.c.l.b16 %v759
        %v908 = vunpack.c.h.b16 %v759
        %v909 = vunpack.c.l.b16 %v760
        %v910 = vunpack.c.h.b16 %v760
        %v911 = vunpack.c.l.b16 %v761
        %v912 = vunpack.c.h.b16 %v761
        %v913 = vunpack.c.l.b16 %v762
        %v914 = vunpack.c.h.b16 %v762
        %v915 = vunpack.c.l.b16 %v763
        %v916 = vunpack.c.h.b16 %v763
        %v917 = vunpack.c.l.b16 %v764
        %v918 = vunpack.c.h.b16 %v764
        %v919 = vunpack.c.l.b16 %v765
        %v920 = vunpack.c.h.b16 %v765
        %v921 = vunpack.c.l.b16 %v766
        %v922 = vunpack.c.h.b16 %v766
        %v923 = vunpack.c.l.b16 %v767
        %v924 = vunpack.c.h.b16 %v767
        %v925 = vunpack.c.l.b16 %v768
        %v926 = vunpack.c.h.b16 %v768
        %v927 = vunpack.c.l.b16 %v769
        %v928 = vunpack.c.h.b16 %v769
        %v929 = vunpack.c.l.b16 %v770
        %v930 = vunpack.c.h.b16 %v770
        %v931 = vunpack.c.l.b16 %v771
        %v932 = vunpack.c.h.b16 %v771
        %v933 = vunpack.c.l.b16 %v772
        %v934 = vunpack.c.h.b16 %v772
        %v935 = vunpack.c.l.b16 %v773
        %v936 = vunpack.c.h.b16 %v773
        %v937 = vunpack.c.l.b16 %v774
        %v938 = vunpack.c.h.b16 %v774
        %v939 = vunpack.c.l.b16 %v775
        %v940 = vunpack.c.h.b16 %v775
        %v941 = vunpack.c.l.b16 %v776
        %v942 = vunpack.c.h.b16 %v776
        %v943 = vunpack.c.l.b16 %v777
        %v944 = vunpack.c.h.b16 %v777
        %v945 = vunpack.c.l.b16 %v778
        %v946 = vunpack.c.h.b16 %v778
        %v947 = vunpack.c.l.b16 %v779
        %v948 = vunpack.c.h.b16 %v779
        %v949 = vunpack.c.l.b16 %v780
        %v950 = vunpack.c.h.b16 %v780
        %v951 = vunpack.c.l.b16 %v781
        %v952 = vunpack.c.h.b16 %v781
        %v953 = vunpack.c.l.b16 %v782
        %v954 = vunpack.c.h.b16 %v782
        %v955 = vunpack.c.l.b16 %v783
        %v956 = vunpack.c.h.b16 %v783
        %v957 = vunpack.c.l.b16 %v784
        %v958 = vunpack.c.h.b16 %v784
        %v959 = vunpack.c.l.b16 %v785
        %v960 = vunpack.c.h.b16 %v785
        %v961 = vunpack.c.l.b16 %v786
        %v962 = vunpack.c.h.b16 %v786
        %v963 = vunpack.c.l.b16 %v787
        %v964 = vunpack.c.h.b16 %v787
        %v965 = vunpack.c.l.b16 %v788
        %v966 = vunpack.c.h.b16 %v788
        %v967 = vunpack.c.l.b16 %v789
        %v968 = vunpack.c.h.b16 %v789
        %v969 = vunpack.c.l.b16 %v790
        %v970 = vunpack.c.h.b16 %v790
        %v971 = vunpack.c.l.b16 %v791
        %v972 = vunpack.c.h.b16 %v791
        %v973 = vunpack.c.l.b16 %v792
        %v974 = vunpack.c.h.b16 %v792
        %v975 = vunpack.c.l.b16 %v793
        %v976 = vunpack.c.h.b16 %v793
        %v977 = vunpack.c.l.b16 %v794
        %v978 = vunpack.c.h.b16 %v794
        %v979 = vunpack.c.l.b16 %v795
        %v980 = vunpack.c.h.b16 %v795
        %v981 = vunpack.c.l.b16 %v796
        %v982 = vunpack.c.h.b16 %v796
        %v983 = vunpack.c.l.b16 %v797
        %v984 = vunpack.c.h.b16 %v797
        %v985 = vunpack.c.l.b16 %v798
        %v986 = vunpack.c.h.b16 %v798
        %v987 = vunpack.c.l.b16 %v799
        %v988 = vunpack.c.h.b16 %v799
        %v989 = vunpack.c.l.b16 %v800
        %v990 = vunpack.c.h.b16 %v800
        %v991 = vunpack.c.l.b16 %v801
        %v992 = vunpack.c.h.b16 %v801
        %v993 = vunpack.c.l.b16 %v802
        %v994 = vunpack.c.h.b16 %v802
        %v995 = vunpack.c.l.b16 %v803
        %v996 = vunpack.c.h.b16 %v803
        %v997 = vunpack.c.l.b16 %v804
        %v998 = vunpack.c.h.b16 %v804
        %v999 = vunpack.c.l.b16 %v805
        %v1000 = vunpack.c.h.b16 %v805
        %v1001 = vunpack.c.l.b16 %v806
        %v1002 = vunpack.c.h.b16 %v806
        %v1003 = vunpack.c.l.b16 %v807
        %v1004 = vunpack.c.h.b16 %v807
        %v1005 = vunpack.c.l.b16 %v808
        %v1006 = vunpack.c.h.b16 %v808
        %v1007 = vunpack.c.l.b16 %v809
        %v1008 = vunpack.c.h.b16 %v809
        %v1009 = vunpack.c.l.b16 %v810
        %v1010 = vunpack.c.h.b16 %v810
        %v1011 = vunpack.c.l.b16 %v811
        %v1012 = vunpack.c.h.b16 %v811
        %v1013 = vunpack.c.l.b16 %v812
        %v1014 = vunpack.c.h.b16 %v812
        %v1015 = vunpack.c.l.b16 %v813
        %v1016 = vunpack.c.h.b16 %v813
        %v1017 = vunpack.c.l.b16 %v814
        %v1018 = vunpack.c.h.b16 %v814
        %v1019 = vunpack.c.l.b16 %v815
        %v1020 = vunpack.c.h.b16 %v815
        %v1021 = vpack.c.b16 %v895, %v893
        %v1022 = vpack.c.b16 %v896, %v894
        %v1023 = vpack.c.b16 %v899, %v897
        %v1024 = vpack.c.b16 %v900, %v898
        %v1025 = vpack.c.b16 %v903, %v901
        %v1026 = vpack.c.b16 %v904, %v902
        %v1027 = vpack.c.b16 %v907, %v905
        %v1028 = vpack.c.b16 %v908, %v906
        %v1029 = vpack.c.b16 %v911, %v909
        %v1030 = vpack.c.b16 %v912, %v910
        %v1031 = vpack.c.b16 %v915, %v913
        %v1032 = vpack.c.b16 %v916, %v914
        %v1033 = vpack.c.b16 %v919, %v917
        %v1034 = vpack.c.b16 %v920, %v918
        %v1035 = vpack.c.b16 %v923, %v921
        %v1036 = vpack.c.b16 %v924, %v922
        %v1037 = vpack.c.b16 %v927, %v925
        %v1038 = vpack.c.b16 %v928, %v926
        %v1039 = vpack.c.b16 %v931, %v929
        %v1040 = vpack.c.b16 %v932, %v930
        %v1041 = vpack.c.b16 %v935, %v933
        %v1042 = vpack.c.b16 %v936, %v934
        %v1043 = vpack.c.b16 %v939, %v937
        %v1044 = vpack.c.b16 %v940, %v938
        %v1045 = vpack.c.b16 %v943, %v941
        %v1046 = vpack.c.b16 %v944, %v942
        %v1047 = vpack.c.b16 %v947, %v945
        %v1048 = vpack.c.b16 %v948, %v946
        %v1049 = vpack.c.b16 %v951, %v949
        %v1050 = vpack.c.b16 %v952, %v950
        %v1051 = vpack.c.b16 %v955, %v953
        %v1052 = vpack.c.b16 %v956, %v954
        %v1053 = vpack.c.b16 %v959, %v957
        %v1054 = vpack.c.b16 %v960, %v958
        %v1055 = vpack.c.b16 %v963, %v961
        %v1056 = vpack.c.b16 %v964, %v962
        %v1057 = vpack.c.b16 %v967, %v965
        %v1058 = vpack.c.b16 %v968, %v966
        %v1059 = vpack.c.b16 %v971, %v969
        %v1060 = vpack.c.b16 %v972, %v970
        %v1061 = vpack.c.b16 %v975, %v973
        %v1062 = vpack.c.b16 %v976, %v974
        %v1063 = vpack.c.b16 %v979, %v977
        %v1064 = vpack.c.b16 %v980, %v978
        %v1065 = vpack.c.b16 %v983, %v981
        %v1066 = vpack.c.b16 %v984, %v982
        %v1067 = vpack.c.b16 %v987, %v985
        %v1068 = vpack.c.b16 %v988, %v986
        %v1069 = vpack.c.b16 %v991, %v989
        %v1070 = vpack.c.b16 %v992, %v990
        %v1071 = vpack.c.b16 %v995, %v993
        %v1072 = vpack.c.b16 %v996, %v994
        %v1073 = vpack.c.b16 %v999, %v997
        %v1074 = vpack.c.b16 %v1000, %v998
        %v1075 = vpack.c.b16 %v1003, %v1001
        %v1076 = vpack.c.b16 %v1004, %v1002
        %v1077 = vpack.c.b16 %v1007, %v1005
        %v1078 = vpack.c.b16 %v1008, %v1006
        %v1079 = vpack.c.b16 %v1011, %v1009
        %v1080 = vpack.c.b16 %v1012, %v1010
        %v1081 = vpack.c.b16 %v1015, %v1013
        %v1082 = vpack.c.b16 %v1016, %v1014
        %v1083 = vpack.c.b16 %v1019, %v1017
        %v1084 = vpack.c.b16 %v1020, %v1018
        %1149 = vmatprep.subr.bf16.mxu0 %v1022
        %1150 = vmatpush1.bf16.msra.mxu0 %v1021
        %1151 = vmatprep.subr.bf16.mxu0 %v1024
        %1152 = vmatpush1.bf16.msra.mxu0 %v1023
        %1153 = vmatprep.subr.bf16.mxu0 %v1026
        %1154 = vmatpush1.bf16.msra.mxu0 %v1025
        %1155 = vmatprep.subr.bf16.mxu0 %v1028
        %1156 = vmatpush1.bf16.msra.mxu0 %v1027
        %1157 = vmatprep.subr.bf16.mxu0 %v1030
        %1158 = vmatpush1.bf16.msra.mxu0 %v1029
        %1159 = vmatprep.subr.bf16.mxu0 %v1032
        %1160 = vmatpush1.bf16.msra.mxu0 %v1031
        %1161 = vmatprep.subr.bf16.mxu0 %v1034
        %1162 = vmatpush1.bf16.msra.mxu0 %v1033
        %1163 = vmatprep.subr.bf16.mxu0 %v1036
        %1164 = vmatpush1.bf16.msra.mxu0 %v1035
        %1165 = vmatprep.subr.bf16.mxu0 %v1038
        %1166 = vmatpush1.bf16.msra.mxu0 %v1037
        %1167 = vmatprep.subr.bf16.mxu0 %v1040
        %1168 = vmatpush1.bf16.msra.mxu0 %v1039
        %1169 = vmatprep.subr.bf16.mxu0 %v1042
        %1170 = vmatpush1.bf16.msra.mxu0 %v1041
        %1171 = vmatprep.subr.bf16.mxu0 %v1044
        %1172 = vmatpush1.bf16.msra.mxu0 %v1043
        %1173 = vmatprep.subr.bf16.mxu0 %v1046
        %1174 = vmatpush1.bf16.msra.mxu0 %v1045
        %1175 = vmatprep.subr.bf16.mxu0 %v1048
        %1176 = vmatpush1.bf16.msra.mxu0 %v1047
        %1177 = vmatprep.subr.bf16.mxu0 %v1050
        %1178 = vmatpush1.bf16.msra.mxu0 %v1049
        %1179 = vmatprep.subr.bf16.mxu0 %v1052
        %1180 = vmatpush1.bf16.msra.mxu0 %v1051
        %1181 = vmatprep.mubr.bf16.mxu0 %v330
        %1182 = vmatmul.mubr.bf16.gmra.mrb[0].mxu0 %v323
        %v1183 = vpop.f32.mrb[0].mxu0
        %v1184 = vadd.f32 %v822, %v1183
        %v1185 = vpop.f32.mrb[0].mxu0
        %v1186 = vadd.f32 %v826, %v1185
        %v1187 = vpop.f32.mrb[0].mxu0
        %v1188 = vpop.f32.mrb[0].mxu0
        %1189 = vdwg.mxu0
        %1190 = vmatprep.subr.bf16.mxu0 %v1054
        %1191 = vmatpush1.bf16.msra.mxu0 %v1053
        %1192 = vmatprep.subr.bf16.mxu0 %v1056
        %1193 = vmatpush1.bf16.msra.mxu0 %v1055
        %1194 = vmatprep.subr.bf16.mxu0 %v1058
        %1195 = vmatpush1.bf16.msra.mxu0 %v1057
        %1196 = vmatprep.subr.bf16.mxu0 %v1060
        %1197 = vmatpush1.bf16.msra.mxu0 %v1059
        %1198 = vmatprep.subr.bf16.mxu0 %v1062
        %1199 = vmatpush1.bf16.msra.mxu0 %v1061
        %1200 = vmatprep.subr.bf16.mxu0 %v1064
        %1201 = vmatpush1.bf16.msra.mxu0 %v1063
        %1202 = vmatprep.subr.bf16.mxu0 %v1066
        %1203 = vmatpush1.bf16.msra.mxu0 %v1065
        %1204 = vmatprep.subr.bf16.mxu0 %v1068
        %1205 = vmatpush1.bf16.msra.mxu0 %v1067
        %1206 = vmatprep.subr.bf16.mxu0 %v1070
        %1207 = vmatpush1.bf16.msra.mxu0 %v1069
        %1208 = vmatprep.subr.bf16.mxu0 %v1072
        %1209 = vmatpush1.bf16.msra.mxu0 %v1071
        %1210 = vmatprep.subr.bf16.mxu0 %v1074
        %1211 = vmatpush1.bf16.msra.mxu0 %v1073
        %1212 = vmatprep.subr.bf16.mxu0 %v1076
        %1213 = vmatpush1.bf16.msra.mxu0 %v1075
        %1214 = vmatprep.subr.bf16.mxu0 %v1078
        %1215 = vmatpush1.bf16.msra.mxu0 %v1077
        %1216 = vmatprep.subr.bf16.mxu0 %v1080
        %1217 = vmatpush1.bf16.msra.mxu0 %v1079
        %1218 = vmatprep.subr.bf16.mxu0 %v1082
        %1219 = vmatpush1.bf16.msra.mxu0 %v1081
        %1220 = vmatprep.subr.bf16.mxu0 %v1084
        %1221 = vmatpush1.bf16.msra.mxu0 %v1083
        %1222 = vmatprep.mubr.bf16.mxu0 %v332
        %1223 = vmatmul.mubr.bf16.gmra.mrb[0].mxu0 %v331
        %v1224 = vpop.f32.mrb[0].mxu0
        %v1225 = vadd.f32 %v1184, %v1224
        %v1226 = vpop.f32.mrb[0].mxu0
        %v1227 = vadd.f32 %v1186, %v1226
        %v1228 = vpop.f32.mrb[0].mxu0
        %v1229 = vpop.f32.mrb[0].mxu0
        %1230 = vdwg.mxu0
        %v1233 = vcombine.low %v1225, %v1227
        %v1235 = vunpack.c.l.s4 1983009808
        %v1236 = vunpack.c.0.s8 %v1235
        %v1237 = vlaneseq
        %v1238 = vshrl.u32 %v1237, 7
        %v1239 = vsub.s32 %v1236, %v1238
        %v1240 = vrot.slane %v1233, %v1239
        %s1242 = scalar_lea.vmem %s228, 4 [#allocation7]
        %1243 = vst [vmem:[%s1242] sm:$0xf] %v1240
        %s1244 = scalar_lea.vmem %s192, 1024 [#allocation2]
        %v1245 = vld [vmem:[%s1244] sm:$0xff]
        %v1246 = vld [vmem:[%s1244 + $0x8] sm:$0xff]
        %v1247 = vld [vmem:[%s1244 + $0x10] sm:$0xff]
        %v1248 = vld [vmem:[%s1244 + $0x18] sm:$0xff]
        %v1249 = vld [vmem:[%s1244 + $0x20] sm:$0xff]
        %v1250 = vld [vmem:[%s1244 + $0x28] sm:$0xff]
        %v1251 = vld [vmem:[%s1244 + $0x30] sm:$0xff]
        %v1252 = vld [vmem:[%s1244 + $0x38] sm:$0xff]
        %v1253 = vld [vmem:[%s1244 + $0x40] sm:$0xff]
        %v1254 = vld [vmem:[%s1244 + $0x48] sm:$0xff]
        %v1255 = vld [vmem:[%s1244 + $0x50] sm:$0xff]
        %v1256 = vld [vmem:[%s1244 + $0x58] sm:$0xff]
        %v1257 = vld [vmem:[%s1244 + $0x60] sm:$0xff]
        %v1258 = vld [vmem:[%s1244 + $0x68] sm:$0xff]
        %v1259 = vld [vmem:[%s1244 + $0x70] sm:$0xff]
        %v1260 = vld [vmem:[%s1244 + $0x78] sm:$0xff]
        %v1261 = vld [vmem:[%s1244 + $0x80] sm:$0xff]
        %v1262 = vld [vmem:[%s1244 + $0x88] sm:$0xff]
        %v1263 = vld [vmem:[%s1244 + $0x90] sm:$0xff]
        %v1264 = vld [vmem:[%s1244 + $0x98] sm:$0xff]
        %v1265 = vld [vmem:[%s1244 + $0xa0] sm:$0xff]
        %v1266 = vld [vmem:[%s1244 + $0xa8] sm:$0xff]
        %v1267 = vld [vmem:[%s1244 + $0xb0] sm:$0xff]
        %v1268 = vld [vmem:[%s1244 + $0xb8] sm:$0xff]
        %v1269 = vld [vmem:[%s1244 + $0xc0] sm:$0xff]
        %v1270 = vld [vmem:[%s1244 + $0xc8] sm:$0xff]
        %v1271 = vld [vmem:[%s1244 + $0xd0] sm:$0xff]
        %v1272 = vld [vmem:[%s1244 + $0xd8] sm:$0xff]
        %v1273 = vld [vmem:[%s1244 + $0xe0] sm:$0xff]
        %v1274 = vld [vmem:[%s1244 + $0xe8] sm:$0xff]
        %v1275 = vld [vmem:[%s1244 + $0xf0] sm:$0xff]
        %v1276 = vld [vmem:[%s1244 + $0xf8] sm:$0xff]
        %v1277 = vld [vmem:[%s1244 + $0x100] sm:$0xff]
        %v1278 = vld [vmem:[%s1244 + $0x108] sm:$0xff]
        %v1279 = vld [vmem:[%s1244 + $0x110] sm:$0xff]
        %v1280 = vld [vmem:[%s1244 + $0x118] sm:$0xff]
        %v1281 = vld [vmem:[%s1244 + $0x120] sm:$0xff]
        %v1282 = vld [vmem:[%s1244 + $0x128] sm:$0xff]
        %v1283 = vld [vmem:[%s1244 + $0x130] sm:$0xff]
        %v1284 = vld [vmem:[%s1244 + $0x138] sm:$0xff]
        %v1285 = vld [vmem:[%s1244 + $0x140] sm:$0xff]
        %v1286 = vld [vmem:[%s1244 + $0x148] sm:$0xff]
        %v1287 = vld [vmem:[%s1244 + $0x150] sm:$0xff]
        %v1288 = vld [vmem:[%s1244 + $0x158] sm:$0xff]
        %v1289 = vld [vmem:[%s1244 + $0x160] sm:$0xff]
        %v1290 = vld [vmem:[%s1244 + $0x168] sm:$0xff]
        %v1291 = vld [vmem:[%s1244 + $0x170] sm:$0xff]
        %v1292 = vld [vmem:[%s1244 + $0x178] sm:$0xff]
        %v1293 = vld [vmem:[%s1244 + $0x180] sm:$0xff]
        %v1294 = vld [vmem:[%s1244 + $0x188] sm:$0xff]
        %v1295 = vld [vmem:[%s1244 + $0x190] sm:$0xff]
        %v1296 = vld [vmem:[%s1244 + $0x198] sm:$0xff]
        %v1297 = vld [vmem:[%s1244 + $0x1a0] sm:$0xff]
        %v1298 = vld [vmem:[%s1244 + $0x1a8] sm:$0xff]
        %v1299 = vld [vmem:[%s1244 + $0x1b0] sm:$0xff]
        %v1300 = vld [vmem:[%s1244 + $0x1b8] sm:$0xff]
        %v1301 = vld [vmem:[%s1244 + $0x1c0] sm:$0xff]
        %v1302 = vld [vmem:[%s1244 + $0x1c8] sm:$0xff]
        %v1303 = vld [vmem:[%s1244 + $0x1d0] sm:$0xff]
        %v1304 = vld [vmem:[%s1244 + $0x1d8] sm:$0xff]
        %v1305 = vld [vmem:[%s1244 + $0x1e0] sm:$0xff]
        %v1306 = vld [vmem:[%s1244 + $0x1e8] sm:$0xff]
        %v1307 = vld [vmem:[%s1244 + $0x1f0] sm:$0xff]
        %v1308 = vld [vmem:[%s1244 + $0x1f8] sm:$0xff]
        %s1309 = scalar_lea.vmem %s201, 4 [#allocation5]
        %v1310 = vld [vmem:[%s1309] sm:$0x3]
        %v1312 = vlaneseq
        %v1313 = vshrl.u32 %v1312, 7
        %v1314 = vsub.s32 0, %v1313
        %v1315 = vrot.slane %v1310, %v1314
        %v1316 = vlaneseq
        %v1317 = vshrl.u32 %v1316, 7
        %v1318 = vsub.s32 1, %v1317
        %v1319 = vrot.slane %v1310, %v1318
        %v1386 = vunpack.c.l.b16 %v1245
        %v1387 = vunpack.c.h.b16 %v1245
        %v1388 = vunpack.c.l.b16 %v1246
        %v1389 = vunpack.c.h.b16 %v1246
        %v1390 = vunpack.c.l.b16 %v1247
        %v1391 = vunpack.c.h.b16 %v1247
        %v1392 = vunpack.c.l.b16 %v1248
        %v1393 = vunpack.c.h.b16 %v1248
        %v1394 = vunpack.c.l.b16 %v1249
        %v1395 = vunpack.c.h.b16 %v1249
        %v1396 = vunpack.c.l.b16 %v1250
        %v1397 = vunpack.c.h.b16 %v1250
        %v1398 = vunpack.c.l.b16 %v1251
        %v1399 = vunpack.c.h.b16 %v1251
        %v1400 = vunpack.c.l.b16 %v1252
        %v1401 = vunpack.c.h.b16 %v1252
        %v1402 = vunpack.c.l.b16 %v1253
        %v1403 = vunpack.c.h.b16 %v1253
        %v1404 = vunpack.c.l.b16 %v1254
        %v1405 = vunpack.c.h.b16 %v1254
        %v1406 = vunpack.c.l.b16 %v1255
        %v1407 = vunpack.c.h.b16 %v1255
        %v1408 = vunpack.c.l.b16 %v1256
        %v1409 = vunpack.c.h.b16 %v1256
        %v1410 = vunpack.c.l.b16 %v1257
        %v1411 = vunpack.c.h.b16 %v1257
        %v1412 = vunpack.c.l.b16 %v1258
        %v1413 = vunpack.c.h.b16 %v1258
        %v1414 = vunpack.c.l.b16 %v1259
        %v1415 = vunpack.c.h.b16 %v1259
        %v1416 = vunpack.c.l.b16 %v1260
        %v1417 = vunpack.c.h.b16 %v1260
        %v1418 = vunpack.c.l.b16 %v1261
        %v1419 = vunpack.c.h.b16 %v1261
        %v1420 = vunpack.c.l.b16 %v1262
        %v1421 = vunpack.c.h.b16 %v1262
        %v1422 = vunpack.c.l.b16 %v1263
        %v1423 = vunpack.c.h.b16 %v1263
        %v1424 = vunpack.c.l.b16 %v1264
        %v1425 = vunpack.c.h.b16 %v1264
        %v1426 = vunpack.c.l.b16 %v1265
        %v1427 = vunpack.c.h.b16 %v1265
        %v1428 = vunpack.c.l.b16 %v1266
        %v1429 = vunpack.c.h.b16 %v1266
        %v1430 = vunpack.c.l.b16 %v1267
        %v1431 = vunpack.c.h.b16 %v1267
        %v1432 = vunpack.c.l.b16 %v1268
        %v1433 = vunpack.c.h.b16 %v1268
        %v1434 = vunpack.c.l.b16 %v1269
        %v1435 = vunpack.c.h.b16 %v1269
        %v1436 = vunpack.c.l.b16 %v1270
        %v1437 = vunpack.c.h.b16 %v1270
        %v1438 = vunpack.c.l.b16 %v1271
        %v1439 = vunpack.c.h.b16 %v1271
        %v1440 = vunpack.c.l.b16 %v1272
        %v1441 = vunpack.c.h.b16 %v1272
        %v1442 = vunpack.c.l.b16 %v1273
        %v1443 = vunpack.c.h.b16 %v1273
        %v1444 = vunpack.c.l.b16 %v1274
        %v1445 = vunpack.c.h.b16 %v1274
        %v1446 = vunpack.c.l.b16 %v1275
        %v1447 = vunpack.c.h.b16 %v1275
        %v1448 = vunpack.c.l.b16 %v1276
        %v1449 = vunpack.c.h.b16 %v1276
        %v1450 = vunpack.c.l.b16 %v1277
        %v1451 = vunpack.c.h.b16 %v1277
        %v1452 = vunpack.c.l.b16 %v1278
        %v1453 = vunpack.c.h.b16 %v1278
        %v1454 = vunpack.c.l.b16 %v1279
        %v1455 = vunpack.c.h.b16 %v1279
        %v1456 = vunpack.c.l.b16 %v1280
        %v1457 = vunpack.c.h.b16 %v1280
        %v1458 = vunpack.c.l.b16 %v1281
        %v1459 = vunpack.c.h.b16 %v1281
        %v1460 = vunpack.c.l.b16 %v1282
        %v1461 = vunpack.c.h.b16 %v1282
        %v1462 = vunpack.c.l.b16 %v1283
        %v1463 = vunpack.c.h.b16 %v1283
        %v1464 = vunpack.c.l.b16 %v1284
        %v1465 = vunpack.c.h.b16 %v1284
        %v1466 = vunpack.c.l.b16 %v1285
        %v1467 = vunpack.c.h.b16 %v1285
        %v1468 = vunpack.c.l.b16 %v1286
        %v1469 = vunpack.c.h.b16 %v1286
        %v1470 = vunpack.c.l.b16 %v1287
        %v1471 = vunpack.c.h.b16 %v1287
        %v1472 = vunpack.c.l.b16 %v1288
        %v1473 = vunpack.c.h.b16 %v1288
        %v1474 = vunpack.c.l.b16 %v1289
        %v1475 = vunpack.c.h.b16 %v1289
        %v1476 = vunpack.c.l.b16 %v1290
        %v1477 = vunpack.c.h.b16 %v1290
        %v1478 = vunpack.c.l.b16 %v1291
        %v1479 = vunpack.c.h.b16 %v1291
        %v1480 = vunpack.c.l.b16 %v1292
        %v1481 = vunpack.c.h.b16 %v1292
        %v1482 = vunpack.c.l.b16 %v1293
        %v1483 = vunpack.c.h.b16 %v1293
        %v1484 = vunpack.c.l.b16 %v1294
        %v1485 = vunpack.c.h.b16 %v1294
        %v1486 = vunpack.c.l.b16 %v1295
        %v1487 = vunpack.c.h.b16 %v1295
        %v1488 = vunpack.c.l.b16 %v1296
        %v1489 = vunpack.c.h.b16 %v1296
        %v1490 = vunpack.c.l.b16 %v1297
        %v1491 = vunpack.c.h.b16 %v1297
        %v1492 = vunpack.c.l.b16 %v1298
        %v1493 = vunpack.c.h.b16 %v1298
        %v1494 = vunpack.c.l.b16 %v1299
        %v1495 = vunpack.c.h.b16 %v1299
        %v1496 = vunpack.c.l.b16 %v1300
        %v1497 = vunpack.c.h.b16 %v1300
        %v1498 = vunpack.c.l.b16 %v1301
        %v1499 = vunpack.c.h.b16 %v1301
        %v1500 = vunpack.c.l.b16 %v1302
        %v1501 = vunpack.c.h.b16 %v1302
        %v1502 = vunpack.c.l.b16 %v1303
        %v1503 = vunpack.c.h.b16 %v1303
        %v1504 = vunpack.c.l.b16 %v1304
        %v1505 = vunpack.c.h.b16 %v1304
        %v1506 = vunpack.c.l.b16 %v1305
        %v1507 = vunpack.c.h.b16 %v1305
        %v1508 = vunpack.c.l.b16 %v1306
        %v1509 = vunpack.c.h.b16 %v1306
        %v1510 = vunpack.c.l.b16 %v1307
        %v1511 = vunpack.c.h.b16 %v1307
        %v1512 = vunpack.c.l.b16 %v1308
        %v1513 = vunpack.c.h.b16 %v1308
        %v1514 = vpack.c.b16 %v1388, %v1386
        %v1515 = vpack.c.b16 %v1389, %v1387
        %v1516 = vpack.c.b16 %v1392, %v1390
        %v1517 = vpack.c.b16 %v1393, %v1391
        %v1518 = vpack.c.b16 %v1396, %v1394
        %v1519 = vpack.c.b16 %v1397, %v1395
        %v1520 = vpack.c.b16 %v1400, %v1398
        %v1521 = vpack.c.b16 %v1401, %v1399
        %v1522 = vpack.c.b16 %v1404, %v1402
        %v1523 = vpack.c.b16 %v1405, %v1403
        %v1524 = vpack.c.b16 %v1408, %v1406
        %v1525 = vpack.c.b16 %v1409, %v1407
        %v1526 = vpack.c.b16 %v1412, %v1410
        %v1527 = vpack.c.b16 %v1413, %v1411
        %v1528 = vpack.c.b16 %v1416, %v1414
        %v1529 = vpack.c.b16 %v1417, %v1415
        %v1530 = vpack.c.b16 %v1420, %v1418
        %v1531 = vpack.c.b16 %v1421, %v1419
        %v1532 = vpack.c.b16 %v1424, %v1422
        %v1533 = vpack.c.b16 %v1425, %v1423
        %v1534 = vpack.c.b16 %v1428, %v1426
        %v1535 = vpack.c.b16 %v1429, %v1427
        %v1536 = vpack.c.b16 %v1432, %v1430
        %v1537 = vpack.c.b16 %v1433, %v1431
        %v1538 = vpack.c.b16 %v1436, %v1434
        %v1539 = vpack.c.b16 %v1437, %v1435
        %v1540 = vpack.c.b16 %v1440, %v1438
        %v1541 = vpack.c.b16 %v1441, %v1439
        %v1542 = vpack.c.b16 %v1444, %v1442
        %v1543 = vpack.c.b16 %v1445, %v1443
        %v1544 = vpack.c.b16 %v1448, %v1446
        %v1545 = vpack.c.b16 %v1449, %v1447
        %v1546 = vpack.c.b16 %v1452, %v1450
        %v1547 = vpack.c.b16 %v1453, %v1451
        %v1548 = vpack.c.b16 %v1456, %v1454
        %v1549 = vpack.c.b16 %v1457, %v1455
        %v1550 = vpack.c.b16 %v1460, %v1458
        %v1551 = vpack.c.b16 %v1461, %v1459
        %v1552 = vpack.c.b16 %v1464, %v1462
        %v1553 = vpack.c.b16 %v1465, %v1463
        %v1554 = vpack.c.b16 %v1468, %v1466
        %v1555 = vpack.c.b16 %v1469, %v1467
        %v1556 = vpack.c.b16 %v1472, %v1470
        %v1557 = vpack.c.b16 %v1473, %v1471
        %v1558 = vpack.c.b16 %v1476, %v1474
        %v1559 = vpack.c.b16 %v1477, %v1475
        %v1560 = vpack.c.b16 %v1480, %v1478
        %v1561 = vpack.c.b16 %v1481, %v1479
        %v1562 = vpack.c.b16 %v1484, %v1482
        %v1563 = vpack.c.b16 %v1485, %v1483
        %v1564 = vpack.c.b16 %v1488, %v1486
        %v1565 = vpack.c.b16 %v1489, %v1487
        %v1566 = vpack.c.b16 %v1492, %v1490
        %v1567 = vpack.c.b16 %v1493, %v1491
        %v1568 = vpack.c.b16 %v1496, %v1494
        %v1569 = vpack.c.b16 %v1497, %v1495
        %v1570 = vpack.c.b16 %v1500, %v1498
        %v1571 = vpack.c.b16 %v1501, %v1499
        %v1572 = vpack.c.b16 %v1504, %v1502
        %v1573 = vpack.c.b16 %v1505, %v1503
        %v1574 = vpack.c.b16 %v1508, %v1506
        %v1575 = vpack.c.b16 %v1509, %v1507
        %v1576 = vpack.c.b16 %v1512, %v1510
        %v1577 = vpack.c.b16 %v1513, %v1511
        %1642 = vmatprep.subr.bf16.mxu0 %v1515
        %1643 = vmatpush1.bf16.msra.mxu0 %v1514
        %1644 = vmatprep.subr.bf16.mxu0 %v1517
        %1645 = vmatpush1.bf16.msra.mxu0 %v1516
        %1646 = vmatprep.subr.bf16.mxu0 %v1519
        %1647 = vmatpush1.bf16.msra.mxu0 %v1518
        %1648 = vmatprep.subr.bf16.mxu0 %v1521
        %1649 = vmatpush1.bf16.msra.mxu0 %v1520
        %1650 = vmatprep.subr.bf16.mxu0 %v1523
        %1651 = vmatpush1.bf16.msra.mxu0 %v1522
        %1652 = vmatprep.subr.bf16.mxu0 %v1525
        %1653 = vmatpush1.bf16.msra.mxu0 %v1524
        %1654 = vmatprep.subr.bf16.mxu0 %v1527
        %1655 = vmatpush1.bf16.msra.mxu0 %v1526
        %1656 = vmatprep.subr.bf16.mxu0 %v1529
        %1657 = vmatpush1.bf16.msra.mxu0 %v1528
        %1658 = vmatprep.subr.bf16.mxu0 %v1531
        %1659 = vmatpush1.bf16.msra.mxu0 %v1530
        %1660 = vmatprep.subr.bf16.mxu0 %v1533
        %1661 = vmatpush1.bf16.msra.mxu0 %v1532
        %1662 = vmatprep.subr.bf16.mxu0 %v1535
        %1663 = vmatpush1.bf16.msra.mxu0 %v1534
        %1664 = vmatprep.subr.bf16.mxu0 %v1537
        %1665 = vmatpush1.bf16.msra.mxu0 %v1536
        %1666 = vmatprep.subr.bf16.mxu0 %v1539
        %1667 = vmatpush1.bf16.msra.mxu0 %v1538
        %1668 = vmatprep.subr.bf16.mxu0 %v1541
        %1669 = vmatpush1.bf16.msra.mxu0 %v1540
        %1670 = vmatprep.subr.bf16.mxu0 %v1543
        %1671 = vmatpush1.bf16.msra.mxu0 %v1542
        %1672 = vmatprep.subr.bf16.mxu0 %v1545
        %1673 = vmatpush1.bf16.msra.mxu0 %v1544
        %1674 = vmatprep.mubr.bf16.mxu0 %v330
        %1675 = vmatmul.mubr.bf16.gmra.mrb[0].mxu0 %v323
        %v1676 = vpop.f32.mrb[0].mxu0
        %v1677 = vadd.f32 %v1315, %v1676
        %v1678 = vpop.f32.mrb[0].mxu0
        %v1679 = vadd.f32 %v1319, %v1678
        %v1680 = vpop.f32.mrb[0].mxu0
        %v1681 = vpop.f32.mrb[0].mxu0
        %1682 = vdwg.mxu0
        %1683 = vmatprep.subr.bf16.mxu0 %v1547
        %1684 = vmatpush1.bf16.msra.mxu0 %v1546
        %1685 = vmatprep.subr.bf16.mxu0 %v1549
        %1686 = vmatpush1.bf16.msra.mxu0 %v1548
        %1687 = vmatprep.subr.bf16.mxu0 %v1551
        %1688 = vmatpush1.bf16.msra.mxu0 %v1550
        %1689 = vmatprep.subr.bf16.mxu0 %v1553
        %1690 = vmatpush1.bf16.msra.mxu0 %v1552
        %1691 = vmatprep.subr.bf16.mxu0 %v1555
        %1692 = vmatpush1.bf16.msra.mxu0 %v1554
        %1693 = vmatprep.subr.bf16.mxu0 %v1557
        %1694 = vmatpush1.bf16.msra.mxu0 %v1556
        %1695 = vmatprep.subr.bf16.mxu0 %v1559
        %1696 = vmatpush1.bf16.msra.mxu0 %v1558
        %1697 = vmatprep.subr.bf16.mxu0 %v1561
        %1698 = vmatpush1.bf16.msra.mxu0 %v1560
        %1699 = vmatprep.subr.bf16.mxu0 %v1563
        %1700 = vmatpush1.bf16.msra.mxu0 %v1562
        %1701 = vmatprep.subr.bf16.mxu0 %v1565
        %1702 = vmatpush1.bf16.msra.mxu0 %v1564
        %1703 = vmatprep.subr.bf16.mxu0 %v1567
        %1704 = vmatpush1.bf16.msra.mxu0 %v1566
        %1705 = vmatprep.subr.bf16.mxu0 %v1569
        %1706 = vmatpush1.bf16.msra.mxu0 %v1568
        %1707 = vmatprep.subr.bf16.mxu0 %v1571
        %1708 = vmatpush1.bf16.msra.mxu0 %v1570
        %1709 = vmatprep.subr.bf16.mxu0 %v1573
        %1710 = vmatpush1.bf16.msra.mxu0 %v1572
        %1711 = vmatprep.subr.bf16.mxu0 %v1575
        %1712 = vmatpush1.bf16.msra.mxu0 %v1574
        %1713 = vmatprep.subr.bf16.mxu0 %v1577
        %1714 = vmatpush1.bf16.msra.mxu0 %v1576
        %1715 = vmatprep.mubr.bf16.mxu0 %v332
        %1716 = vmatmul.mubr.bf16.gmra.mrb[0].mxu0 %v331
        %v1717 = vpop.f32.mrb[0].mxu0
        %v1718 = vadd.f32 %v1677, %v1717
        %v1719 = vpop.f32.mrb[0].mxu0
        %v1720 = vadd.f32 %v1679, %v1719
        %v1721 = vpop.f32.mrb[0].mxu0
        %v1722 = vpop.f32.mrb[0].mxu0
        %1723 = vdwg.mxu0
        %v1726 = vcombine.low %v1718, %v1720
        %v1728 = vunpack.c.l.s4 1983009808
        %v1729 = vunpack.c.0.s8 %v1728
        %v1730 = vlaneseq
        %v1731 = vshrl.u32 %v1730, 7
        %v1732 = vsub.s32 %v1729, %v1731
        %v1733 = vrot.slane %v1726, %v1732
        %s1735 = scalar_lea.vmem %s228, 8 [#allocation7]
        %1736 = vst [vmem:[%s1735] sm:$0xf] %v1733
        %s1737 = sand.u32 %s104, 1
        %s1738 = scalar_lea.sflag [#allocation4], %s1737
        %s1739 = sand.u32 %s104, 1
        %s1740 = smul.addr %s1739, 12
        %s1741 = scalar_lea.vmem [#allocation7], %s1740
        // Predicated region
        $region41: #{_hops_forward.1} parent=31 // pred_check
          %p1742 = pneg %p114
        $region42: #{_hops_forward.1} parent=31 // pred_check_branch
          %1744 = sbr.rel (%p1742) target = $region44
        $region43: #{_hops_forward.1} parent=31 // pred_region
          %s1745 = smul.u32 2, %s23
          %s1747 = ssub.s32 192, 192
          %1748 = vsyncadd %s1738, %s1747
          %s1749 = smul.addr %s1745, 32
          %s1750 = scalar_lea.hbm %s3, %s1749
          %s1751 = sshll.u32 %s1741, 4
          %s1752 = int_to_ptr.vmem [resolvable:$true] %s1751
          %1757 = dma.vmem_to_hbm [thread:$0]  %s1752, 192, %s1750, %s1738, 64, 128, 4
        $region44: #{_hops_forward.1} parent=31 // pred_fallthru
          _
      $region32: #{_hops_forward.1} parent=5 // pred_fallthru
        _
      %p1758 = scmp.le.s32.totalorder 2, %s18
      // Predicated region
      $region45: #{_hops_forward.1} parent=5 // pred_check
        %p1759 = pneg %p1758
      $region46: #{_hops_forward.1} parent=5 // pred_check_branch
        %1761 = sbr.rel (%p1759) target = $region48
      $region47: #{_hops_forward.1} parent=5 // pred_region
        %s1762 = ssub.s32 %s18, 2
        // Predicated region
        $region49: #{_hops_forward.1} parent=47 // pred_check
          %p1763 = pneg %p120
        $region50: #{_hops_forward.1} parent=47 // pred_check_branch
          %1765 = sbr.rel (%p1763) target = $region52
        $region51: #{_hops_forward.1} parent=47 // pred_region
          %s1766 = sand.u32 %s105, 1
          %s1767 = scalar_lea.sflag [#allocation4], %s1766
          %s1768 = sand.u32 %s105, 1
          %s1769 = smul.addr %s1768, 12
          %s1770 = scalar_lea.vmem [#allocation7], %s1769
          %1771 = dma.done %s1767, 192
        $region52: #{_hops_forward.1} parent=47 // pred_fallthru
          _
      $region48: #{_hops_forward.1} parent=5 // pred_fallthru
        _
    $region6: #{_hops_forward.1} parent=1 // loop_footer
      %s22 = sadd.s32 1, %s18
    $region7: #{_hops_forward.1} parent=1 // loop_footer_branch
      %17 = sbr.rel target = $region3
    $region8: #{_hops_forward.1} parent=1 // loop_exit
      _
    %1772 = vsyncpa [#allocation3], 1
    %s1773 = scalar_lea.sflag [#allocation3], 1
    %1774 = vsyncpa %s1773, 1
    %1775 = vsyncpa [#allocation6], 1
    %s1776 = scalar_lea.sflag [#allocation6], 1
    %1777 = vsyncpa %s1776, 1
    %1778 = vsyncpa [#allocation4], 1
    %s1779 = scalar_lea.sflag [#allocation4], 1
    %1780 = vsyncpa %s1779, 1

</llo_original>
